<compile_context>
chip_gen: v7x
topology: tpu7x:2x2x1
jax: 0.10.0
libtpu: 0.0.40
codegen_flags: <defaults>
</compile_context>

<pallas_src>
import functools

import jax
import jax.numpy as jnp
from jax.experimental import pallas as pl
from jax.experimental.pallas import tpu as pltpu


def _causal_cumsum_lanes(v, lane):
    """Inclusive cumulative sum along the last (lane) axis, exact in f32.

    Hillis-Steele shift-and-add scan: log2(n) pltpu.roll + masked-add steps.
    `lane` is a (1, n) int32 iota along the lane axis (hoisted by the caller).
    """
    n = v.shape[-1]
    d = 1
    while d < n:
        shifted = pltpu.roll(v, d, axis=1)           # shifted[:, t] = v[:, t - d]
        v = v + jnp.where(lane >= d, shifted, jnp.float32(0.0))
        d *= 2
    return v


def _cln_kernel(x_ref, gain_ref, bias_ref, out_ref, csum_ref, cpow_ref,
                *, eps, T, C, Tb, Bb):
    """One grid step == (one block of Bb batch rows) x (one chunk of Tb time steps).

    x_ref    : (Bb, C, Tb)  input chunk (time last -> lane-dense)
    gain_ref : (C, 1)       per-channel gain  (constant index_map -> fetched once)
    bias_ref : (C, 1)       per-channel bias
    out_ref  : (Bb, C, Tb)  output chunk
    csum_ref : (Bb, 1)      running sum carry per batch row (VMEM scratch)
    cpow_ref : (Bb, 1)      running sum-of-squares carry per batch row
    """
    t_blk = pl.program_id(1)

    # Reset the cumulative carries at the start of every batch block's time sweep.
    @pl.when(t_blk == 0)
    def _():
        csum_ref[...] = jnp.zeros_like(csum_ref)
        cpow_ref[...] = jnp.zeros_like(cpow_ref)

    lane = jax.lax.broadcasted_iota(jnp.int32, (1, Tb), 1)        # (1, Tb)
    t_global = t_blk * Tb + lane
    valid = t_global < T                                          # ragged-tail mask
    # entry_cnt[t] = C * (t + 1)
    inv_cnt = 1.0 / ((t_global + 1).astype(jnp.float32) * jnp.float32(C))

    g = gain_ref[...]                                             # (C, 1)
    b = bias_ref[...]                                             # (C, 1)

    for i in range(Bb):                                           # static unroll
        x = x_ref[i].astype(jnp.float32)                          # (C, Tb)

        # Channel reductions; zero lanes past the true sequence end so undefined
        # out-of-bounds data in the ragged last block never reaches scan or carry.
        step_sum = jnp.where(valid, jnp.sum(x, axis=0, keepdims=True), 0.0)
        step_pow = jnp.where(valid, jnp.sum(x * x, axis=0, keepdims=True), 0.0)

        # Cross-block carries: totals through the end of the previous time block.
        c_sum = csum_ref[i:i + 1, :]                              # (1, 1)
        c_pow = cpow_ref[i:i + 1, :]
        csum_ref[i:i + 1, :] = c_sum + jnp.sum(step_sum, axis=1, keepdims=True)
        cpow_ref[i:i + 1, :] = c_pow + jnp.sum(step_pow, axis=1, keepdims=True)

        # Causal within-block cumsum (exact f32 shift-and-add scan) + carry.
        cum_sum = _causal_cumsum_lanes(step_sum, lane) + c_sum    # (1, Tb)
        cum_pow = _causal_cumsum_lanes(step_pow, lane) + c_pow

        cum_mean = cum_sum * inv_cnt
        cum_var = (cum_pow - 2.0 * cum_mean * cum_sum) * inv_cnt + cum_mean * cum_mean
        inv_std = jax.lax.rsqrt(cum_var + eps)                    # (1, Tb)

        # (C,Tb) - (1,Tb): broadcast along sublanes; * (C,1): broadcast along lanes.
        out_ref[i] = ((x - cum_mean) * inv_std * g + b).astype(out_ref.dtype)


@functools.partial(jax.jit, static_argnames=("eps", "block_t"))
def cln_forward(x, gain, bias, eps=1e-8, block_t=512):
    """Equivalent of cLN(dimension=C, eps=eps).forward(x).

    x    : (B, C, T)
    gain : (1, C, 1)
    bias : (1, C, 1)
    returns (B, C, T) in x.dtype
    """
    B, C, T = x.shape
    assert block_t % 128 == 0, "block_t must be a multiple of 128"
    # Don't use a wider time block than needed for short sequences.
    Tb = min(int(block_t), ((T + 127) // 128) * 128)
    n_tblk = pl.cdiv(T, Tb)

    # Fold batch rows into one block when C is small (bigger DMAs, fewer grid steps);
    # force Bb to divide B so no block reads past the batch dimension.
    Bb = 1 if C >= 8 else min(B, max(1, 8 // C))
    while B % Bb:
        Bb -= 1
    n_bblk = B // Bb

    g = gain.reshape(C, 1).astype(jnp.float32)
    b = bias.reshape(C, 1).astype(jnp.float32)

    # VMEM budget: in + out blocks double-buffered plus slack; stay under v7x's
    # 64 MiB physical VMEM so DMA/compute overlap survives on every generation.
    tile_bytes = Bb * C * Tb * max(x.dtype.itemsize, 4)
    vmem_limit = min(int(64 * 2 ** 20), max(int(32 * 2 ** 20), 10 * tile_bytes))

    kernel = functools.partial(_cln_kernel, eps=float(eps), T=T, C=C, Tb=Tb, Bb=Bb)
    return pl.pallas_call(
        kernel,
        out_shape=jax.ShapeDtypeStruct((B, C, T), x.dtype),
        grid_spec=pltpu.PrefetchScalarGridSpec(
            num_scalar_prefetch=0,
            grid=(n_bblk, n_tblk),
            in_specs=[
                pl.BlockSpec((Bb, C, Tb), lambda bb, tt: (bb, 0, tt)),   # x chunk
                pl.BlockSpec((C, 1), lambda bb, tt: (0, 0)),             # gain
                pl.BlockSpec((C, 1), lambda bb, tt: (0, 0)),             # bias
            ],
            out_specs=pl.BlockSpec((Bb, C, Tb), lambda bb, tt: (bb, 0, tt)),
            scratch_shapes=[
                pltpu.VMEM((Bb, 1), jnp.float32),   # running sum carry
                pltpu.VMEM((Bb, 1), jnp.float32),   # running sum-of-squares carry
            ],
        ),
        compiler_params=pltpu.CompilerParams(
            dimension_semantics=("parallel", "arbitrary"),  # batch parallel, time serial
            vmem_limit_bytes=int(vmem_limit),
        ),
    )(x, g, b)


def _reference_cln(x, gain, bias, eps=1e-8):
    """Pure-JAX mirror of the PyTorch cLN.forward."""
    B, C, T = x.shape
    step_sum = x.sum(axis=1)                       # (B, T)
    step_pow_sum = (x * x).sum(axis=1)             # (B, T)
    cum_sum = jnp.cumsum(step_sum, axis=1)
    cum_pow_sum = jnp.cumsum(step_pow_sum, axis=1)
    entry_cnt = jnp.arange(C, C * (T + 1), C, dtype=x.dtype).reshape(1, T)
    cum_mean = cum_sum / entry_cnt
    cum_var = (cum_pow_sum - 2 * cum_mean * cum_sum) / entry_cnt + cum_mean ** 2
    cum_std = jnp.sqrt(cum_var + eps)
    xn = (x - cum_mean[:, None, :]) / cum_std[:, None, :]
    return xn * gain.reshape(1, C, 1) + bias.reshape(1, C, 1)


if __name__ == "__main__":
    # Small shapes consistent with cLN(dimension=4): batch=2, channels=4, time=300
    # (300 < Tb -> exercises the in-kernel ragged-tail masking; Bb=2 batch folding).
    B, C, T = 2, 4, 300
    key = jax.random.PRNGKey(0)
    kx, kg, kb = jax.random.split(key, 3)

    x = jax.random.normal(kx, (B, C, T), jnp.float32)
    # Module initializes gain=1, bias=0; perturb so the affine path is actually tested.
    gain = jnp.ones((1, C, 1), jnp.float32) + 0.1 * jax.random.normal(kg, (1, C, 1), jnp.float32)
    bias = 0.1 * jax.random.normal(kb, (1, C, 1), jnp.float32)

    out = cln_forward(x, gain, bias)
    jax.block_until_ready(out)
    ref = _reference_cln(x, gain, bias)
    assert out.shape == (B, C, T)
    err = float(jnp.max(jnp.abs(out - ref)))
    assert err < 1e-4, f"max abs err {err}"

    # Very short sequence (T=40 << 128), default gain/bias: heavily ragged tail.
    x2 = jax.random.normal(jax.random.PRNGKey(1), (1, C, 40), jnp.float32)
    g2 = jnp.ones((1, C, 1), jnp.float32)
    b2 = jnp.zeros((1, C, 1), jnp.float32)
    out2 = cln_forward(x2, g2, b2)
    jax.block_until_ready(out2)
    ref2 = _reference_cln(x2, g2, b2)
    err2 = float(jnp.max(jnp.abs(out2 - ref2)))
    assert err2 < 1e-4, f"max abs err {err2}"

    # Multi-time-block sequence (T=700 -> 2 blocks of 512): cross-block carry path,
    # plus odd batch size (B=3 -> Bb falls back to 1).
    x3 = jax.random.normal(jax.random.PRNGKey(2), (3, C, 700), jnp.float32)
    out3 = cln_forward(x3, gain, bias)
    jax.block_until_ready(out3)
    ref3 = _reference_cln(x3, gain, bias)
    err3 = float(jnp.max(jnp.abs(out3 - ref3)))
    assert err3 < 1e-4, f"max abs err {err3}"

    print("KERNEL_OK")
</pallas_src>

<mosaic_0001>
module attributes {stable_mosaic.version = 11 : i64} {
  func.func @_cln_kernel(%arg0: i32, %arg1: i32, %arg2: memref<2x4x384xf32, #tpu.memory_space<vmem>>, %arg3: memref<4x1xf32, #tpu.memory_space<vmem>>, %arg4: memref<4x1xf32, #tpu.memory_space<vmem>>, %arg5: memref<2x4x384xf32, #tpu.memory_space<vmem>>, %arg6: memref<2x1xf32, #tpu.memory_space<vmem>>, %arg7: memref<2x1xf32, #tpu.memory_space<vmem>>) attributes {dimension_semantics = [#tpu.dimension_semantics<parallel>, #tpu.dimension_semantics<arbitrary>], iteration_bounds = array<i64: 1, 1>, scalar_prefetch = 0 : i64, scratch_operands = 2 : i64, tpu.core_type = #tpu.core_type<tc>, window_params = [{transform_indices = @transform_0, window_bounds = array<i64: 2, 4, 384>}, {pipeline_mode = #tpu.pipeline_mode<synchronous>, transform_indices = @transform_1, window_bounds = array<i64: 4, 1>}, {pipeline_mode = #tpu.pipeline_mode<synchronous>, transform_indices = @transform_2, window_bounds = array<i64: 4, 1>}, {transform_indices = @transform_3, window_bounds = array<i64: 2, 4, 384>}]} {
    %c0_i32 = arith.constant 0 : i32
    %0 = arith.cmpi eq, %arg1, %c0_i32 : i32
    %1 = arith.extui %0 : i1 to i32
    %c0_i32_0 = arith.constant 0 : i32
    %2 = arith.cmpi ne, %1, %c0_i32_0 : i32
    scf.if %2 {
      %cst_148 = arith.constant 0.000000e+00 : f32
      %328 = vector.broadcast %cst_148 : f32 to vector<2x1xf32>
      %c0_149 = arith.constant 0 : index
      %c0_150 = arith.constant 0 : index
      %329 = vector.load %arg6[%c0_149, %c0_150] : memref<2x1xf32, #tpu.memory_space<vmem>>, vector<2x1xf32>
      tpu.vector_store %arg6[%c0_149, %c0_150], %328 {strides = array<i32>} : memref<2x1xf32, #tpu.memory_space<vmem>>, vector<2x1xf32>,
      %cst_151 = arith.constant 0.000000e+00 : f32
      %330 = vector.broadcast %cst_151 : f32 to vector<2x1xf32>
      %c0_152 = arith.constant 0 : index
      %c0_153 = arith.constant 0 : index
      %331 = vector.load %arg7[%c0_152, %c0_153] : memref<2x1xf32, #tpu.memory_space<vmem>>, vector<2x1xf32>
      tpu.vector_store %arg7[%c0_152, %c0_153], %330 {strides = array<i32>} : memref<2x1xf32, #tpu.memory_space<vmem>>, vector<2x1xf32>,
    } else {
    }
    %3 = tpu.iota {dimensions = array<i32: 1>} : vector<1x384xi32>
    %c384_i32 = arith.constant 384 : i32
    %4 = arith.muli %arg1, %c384_i32 : i32
    %5 = vector.broadcast %4 : i32 to vector<1x384xi32>
    %6 = arith.addi %5, %3 : vector<1x384xi32>
    %c300_i32 = arith.constant 300 : i32
    %7 = vector.broadcast %c300_i32 : i32 to vector<1x384xi32>
    %8 = arith.cmpi slt, %6, %7 : vector<1x384xi32>
    %c1_i32 = arith.constant 1 : i32
    %9 = vector.broadcast %c1_i32 : i32 to vector<1x384xi32>
    %10 = arith.addi %6, %9 : vector<1x384xi32>
    %11 = arith.sitofp %10 : vector<1x384xi32> to vector<1x384xf32>
    %cst = arith.constant 4.000000e+00 : f32
    %12 = vector.broadcast %cst : f32 to vector<1x384xf32>
    %13 = arith.mulf %11, %12 : vector<1x384xf32>
    %cst_1 = arith.constant 1.000000e+00 : f32
    %14 = vector.broadcast %cst_1 : f32 to vector<1x384xf32>
    %15 = arith.divf %14, %13 : vector<1x384xf32>
    %c0 = arith.constant 0 : index
    %c0_2 = arith.constant 0 : index
    %16 = vector.load %arg3[%c0, %c0_2] : memref<4x1xf32, #tpu.memory_space<vmem>>, vector<4x1xf32>
    %c0_3 = arith.constant 0 : index
    %c0_4 = arith.constant 0 : index
    %17 = vector.load %arg4[%c0_3, %c0_4] : memref<4x1xf32, #tpu.memory_space<vmem>>, vector<4x1xf32>
    %c0_5 = arith.constant 0 : index
    %c0_6 = arith.constant 0 : index
    %c0_7 = arith.constant 0 : index
    %18 = vector.load %arg2[%c0_5, %c0_6, %c0_7] : memref<2x4x384xf32, #tpu.memory_space<vmem>>, vector<1x4x384xf32>
    %19 = vector.shape_cast %18 : vector<1x4x384xf32> to vector<4x384xf32>
    %cst_8 = arith.constant dense<0.000000e+00> : vector<384xf32>
    %20 = vector.multi_reduction <add>, %19, %cst_8 [0] : vector<4x384xf32> to vector<384xf32>
    %21 = vector.shape_cast %20 : vector<384xf32> to vector<1x384xf32>
    %cst_9 = arith.constant 0.000000e+00 : f32
    %22 = vector.broadcast %cst_9 : f32 to vector<1x384xf32>
    %23 = arith.select %8, %21, %22 : vector<1x384xi1>, vector<1x384xf32>
    %24 = arith.mulf %19, %19 : vector<4x384xf32>
    %cst_10 = arith.constant dense<0.000000e+00> : vector<384xf32>
    %25 = vector.multi_reduction <add>, %24, %cst_10 [0] : vector<4x384xf32> to vector<384xf32>
    %26 = vector.shape_cast %25 : vector<384xf32> to vector<1x384xf32>
    %cst_11 = arith.constant 0.000000e+00 : f32
    %27 = vector.broadcast %cst_11 : f32 to vector<1x384xf32>
    %28 = arith.select %8, %26, %27 : vector<1x384xi1>, vector<1x384xf32>
    %c0_12 = arith.constant 0 : index
    %c0_13 = arith.constant 0 : index
    %29 = vector.load %arg6[%c0_12, %c0_13] : memref<2x1xf32, #tpu.memory_space<vmem>>, vector<1x1xf32>
    %c0_14 = arith.constant 0 : index
    %c0_15 = arith.constant 0 : index
    %30 = vector.load %arg7[%c0_14, %c0_15] : memref<2x1xf32, #tpu.memory_space<vmem>>, vector<1x1xf32>
    %cst_16 = arith.constant dense<0.000000e+00> : vector<1xf32>
    %31 = vector.multi_reduction <add>, %23, %cst_16 [1] : vector<1x384xf32> to vector<1xf32>
    %32 = vector.shape_cast %31 : vector<1xf32> to vector<1x1xf32>
    %33 = arith.addf %29, %32 : vector<1x1xf32>
    %c0_17 = arith.constant 0 : index
    %c0_18 = arith.constant 0 : index
    %34 = vector.load %arg6[%c0_17, %c0_18] : memref<2x1xf32, #tpu.memory_space<vmem>>, vector<1x1xf32>
    tpu.vector_store %arg6[%c0_17, %c0_18], %33 {strides = array<i32>} : memref<2x1xf32, #tpu.memory_space<vmem>>, vector<1x1xf32>,
    %cst_19 = arith.constant dense<0.000000e+00> : vector<1xf32>
    %35 = vector.multi_reduction <add>, %28, %cst_19 [1] : vector<1x384xf32> to vector<1xf32>
    %36 = vector.shape_cast %35 : vector<1xf32> to vector<1x1xf32>
    %37 = arith.addf %30, %36 : vector<1x1xf32>
    %c0_20 = arith.constant 0 : index
    %c0_21 = arith.constant 0 : index
    %38 = vector.load %arg7[%c0_20, %c0_21] : memref<2x1xf32, #tpu.memory_space<vmem>>, vector<1x1xf32>
    tpu.vector_store %arg7[%c0_20, %c0_21], %37 {strides = array<i32>} : memref<2x1xf32, #tpu.memory_space<vmem>>, vector<1x1xf32>,
    %c1_i32_22 = arith.constant 1 : i32
    %39 = tpu.dynamic_rotate %23 by %c1_i32_22 dim 1 : vector<1x384xf32>, i32 -> vector<1x384xf32>
    %c1_i32_23 = arith.constant 1 : i32
    %40 = vector.broadcast %c1_i32_23 : i32 to vector<1x384xi32>
    %41 = arith.cmpi sge, %3, %40 : vector<1x384xi32>
    %cst_24 = arith.constant 0.000000e+00 : f32
    %42 = vector.broadcast %cst_24 : f32 to vector<1x384xf32>
    %43 = arith.select %41, %39, %42 : vector<1x384xi1>, vector<1x384xf32>
    %44 = arith.addf %23, %43 : vector<1x384xf32>
    %c2_i32 = arith.constant 2 : i32
    %45 = tpu.dynamic_rotate %44 by %c2_i32 dim 1 : vector<1x384xf32>, i32 -> vector<1x384xf32>
    %c2_i32_25 = arith.constant 2 : i32
    %46 = vector.broadcast %c2_i32_25 : i32 to vector<1x384xi32>
    %47 = arith.cmpi sge, %3, %46 : vector<1x384xi32>
    %cst_26 = arith.constant 0.000000e+00 : f32
    %48 = vector.broadcast %cst_26 : f32 to vector<1x384xf32>
    %49 = arith.select %47, %45, %48 : vector<1x384xi1>, vector<1x384xf32>
    %50 = arith.addf %44, %49 : vector<1x384xf32>
    %c4_i32 = arith.constant 4 : i32
    %51 = tpu.dynamic_rotate %50 by %c4_i32 dim 1 : vector<1x384xf32>, i32 -> vector<1x384xf32>
    %c4_i32_27 = arith.constant 4 : i32
    %52 = vector.broadcast %c4_i32_27 : i32 to vector<1x384xi32>
    %53 = arith.cmpi sge, %3, %52 : vector<1x384xi32>
    %cst_28 = arith.constant 0.000000e+00 : f32
    %54 = vector.broadcast %cst_28 : f32 to vector<1x384xf32>
    %55 = arith.select %53, %51, %54 : vector<1x384xi1>, vector<1x384xf32>
    %56 = arith.addf %50, %55 : vector<1x384xf32>
    %c8_i32 = arith.constant 8 : i32
    %57 = tpu.dynamic_rotate %56 by %c8_i32 dim 1 : vector<1x384xf32>, i32 -> vector<1x384xf32>
    %c8_i32_29 = arith.constant 8 : i32
    %58 = vector.broadcast %c8_i32_29 : i32 to vector<1x384xi32>
    %59 = arith.cmpi sge, %3, %58 : vector<1x384xi32>
    %cst_30 = arith.constant 0.000000e+00 : f32
    %60 = vector.broadcast %cst_30 : f32 to vector<1x384xf32>
    %61 = arith.select %59, %57, %60 : vector<1x384xi1>, vector<1x384xf32>
    %62 = arith.addf %56, %61 : vector<1x384xf32>
    %c16_i32 = arith.constant 16 : i32
    %63 = tpu.dynamic_rotate %62 by %c16_i32 dim 1 : vector<1x384xf32>, i32 -> vector<1x384xf32>
    %c16_i32_31 = arith.constant 16 : i32
    %64 = vector.broadcast %c16_i32_31 : i32 to vector<1x384xi32>
    %65 = arith.cmpi sge, %3, %64 : vector<1x384xi32>
    %cst_32 = arith.constant 0.000000e+00 : f32
    %66 = vector.broadcast %cst_32 : f32 to vector<1x384xf32>
    %67 = arith.select %65, %63, %66 : vector<1x384xi1>, vector<1x384xf32>
    %68 = arith.addf %62, %67 : vector<1x384xf32>
    %c32_i32 = arith.constant 32 : i32
    %69 = tpu.dynamic_rotate %68 by %c32_i32 dim 1 : vector<1x384xf32>, i32 -> vector<1x384xf32>
    %c32_i32_33 = arith.constant 32 : i32
    %70 = vector.broadcast %c32_i32_33 : i32 to vector<1x384xi32>
    %71 = arith.cmpi sge, %3, %70 : vector<1x384xi32>
    %cst_34 = arith.constant 0.000000e+00 : f32
    %72 = vector.broadcast %cst_34 : f32 to vector<1x384xf32>
    %73 = arith.select %71, %69, %72 : vector<1x384xi1>, vector<1x384xf32>
    %74 = arith.addf %68, %73 : vector<1x384xf32>
    %c64_i32 = arith.constant 64 : i32
    %75 = tpu.dynamic_rotate %74 by %c64_i32 dim 1 : vector<1x384xf32>, i32 -> vector<1x384xf32>
    %c64_i32_35 = arith.constant 64 : i32
    %76 = vector.broadcast %c64_i32_35 : i32 to vector<1x384xi32>
    %77 = arith.cmpi sge, %3, %76 : vector<1x384xi32>
    %cst_36 = arith.constant 0.000000e+00 : f32
    %78 = vector.broadcast %cst_36 : f32 to vector<1x384xf32>
    %79 = arith.select %77, %75, %78 : vector<1x384xi1>, vector<1x384xf32>
    %80 = arith.addf %74, %79 : vector<1x384xf32>
    %c128_i32 = arith.constant 128 : i32
    %81 = tpu.dynamic_rotate %80 by %c128_i32 dim 1 : vector<1x384xf32>, i32 -> vector<1x384xf32>
    %c128_i32_37 = arith.constant 128 : i32
    %82 = vector.broadcast %c128_i32_37 : i32 to vector<1x384xi32>
    %83 = arith.cmpi sge, %3, %82 : vector<1x384xi32>
    %cst_38 = arith.constant 0.000000e+00 : f32
    %84 = vector.broadcast %cst_38 : f32 to vector<1x384xf32>
    %85 = arith.select %83, %81, %84 : vector<1x384xi1>, vector<1x384xf32>
    %86 = arith.addf %80, %85 : vector<1x384xf32>
    %c256_i32 = arith.constant 256 : i32
    %87 = tpu.dynamic_rotate %86 by %c256_i32 dim 1 : vector<1x384xf32>, i32 -> vector<1x384xf32>
    %c256_i32_39 = arith.constant 256 : i32
    %88 = vector.broadcast %c256_i32_39 : i32 to vector<1x384xi32>
    %89 = arith.cmpi sge, %3, %88 : vector<1x384xi32>
    %cst_40 = arith.constant 0.000000e+00 : f32
    %90 = vector.broadcast %cst_40 : f32 to vector<1x384xf32>
    %91 = arith.select %89, %87, %90 : vector<1x384xi1>, vector<1x384xf32>
    %92 = arith.addf %86, %91 : vector<1x384xf32>
    %93 = vector.broadcast %29 : vector<1x1xf32> to vector<1x384xf32>
    %94 = arith.addf %92, %93 : vector<1x384xf32>
    %c1_i32_41 = arith.constant 1 : i32
    %95 = tpu.dynamic_rotate %28 by %c1_i32_41 dim 1 : vector<1x384xf32>, i32 -> vector<1x384xf32>
    %c1_i32_42 = arith.constant 1 : i32
    %96 = vector.broadcast %c1_i32_42 : i32 to vector<1x384xi32>
    %97 = arith.cmpi sge, %3, %96 : vector<1x384xi32>
    %cst_43 = arith.constant 0.000000e+00 : f32
    %98 = vector.broadcast %cst_43 : f32 to vector<1x384xf32>
    %99 = arith.select %97, %95, %98 : vector<1x384xi1>, vector<1x384xf32>
    %100 = arith.addf %28, %99 : vector<1x384xf32>
    %c2_i32_44 = arith.constant 2 : i32
    %101 = tpu.dynamic_rotate %100 by %c2_i32_44 dim 1 : vector<1x384xf32>, i32 -> vector<1x384xf32>
    %c2_i32_45 = arith.constant 2 : i32
    %102 = vector.broadcast %c2_i32_45 : i32 to vector<1x384xi32>
    %103 = arith.cmpi sge, %3, %102 : vector<1x384xi32>
    %cst_46 = arith.constant 0.000000e+00 : f32
    %104 = vector.broadcast %cst_46 : f32 to vector<1x384xf32>
    %105 = arith.select %103, %101, %104 : vector<1x384xi1>, vector<1x384xf32>
    %106 = arith.addf %100, %105 : vector<1x384xf32>
    %c4_i32_47 = arith.constant 4 : i32
    %107 = tpu.dynamic_rotate %106 by %c4_i32_47 dim 1 : vector<1x384xf32>, i32 -> vector<1x384xf32>
    %c4_i32_48 = arith.constant 4 : i32
    %108 = vector.broadcast %c4_i32_48 : i32 to vector<1x384xi32>
    %109 = arith.cmpi sge, %3, %108 : vector<1x384xi32>
    %cst_49 = arith.constant 0.000000e+00 : f32
    %110 = vector.broadcast %cst_49 : f32 to vector<1x384xf32>
    %111 = arith.select %109, %107, %110 : vector<1x384xi1>, vector<1x384xf32>
    %112 = arith.addf %106, %111 : vector<1x384xf32>
    %c8_i32_50 = arith.constant 8 : i32
    %113 = tpu.dynamic_rotate %112 by %c8_i32_50 dim 1 : vector<1x384xf32>, i32 -> vector<1x384xf32>
    %c8_i32_51 = arith.constant 8 : i32
    %114 = vector.broadcast %c8_i32_51 : i32 to vector<1x384xi32>
    %115 = arith.cmpi sge, %3, %114 : vector<1x384xi32>
    %cst_52 = arith.constant 0.000000e+00 : f32
    %116 = vector.broadcast %cst_52 : f32 to vector<1x384xf32>
    %117 = arith.select %115, %113, %116 : vector<1x384xi1>, vector<1x384xf32>
    %118 = arith.addf %112, %117 : vector<1x384xf32>
    %c16_i32_53 = arith.constant 16 : i32
    %119 = tpu.dynamic_rotate %118 by %c16_i32_53 dim 1 : vector<1x384xf32>, i32 -> vector<1x384xf32>
    %c16_i32_54 = arith.constant 16 : i32
    %120 = vector.broadcast %c16_i32_54 : i32 to vector<1x384xi32>
    %121 = arith.cmpi sge, %3, %120 : vector<1x384xi32>
    %cst_55 = arith.constant 0.000000e+00 : f32
    %122 = vector.broadcast %cst_55 : f32 to vector<1x384xf32>
    %123 = arith.select %121, %119, %122 : vector<1x384xi1>, vector<1x384xf32>
    %124 = arith.addf %118, %123 : vector<1x384xf32>
    %c32_i32_56 = arith.constant 32 : i32
    %125 = tpu.dynamic_rotate %124 by %c32_i32_56 dim 1 : vector<1x384xf32>, i32 -> vector<1x384xf32>
    %c32_i32_57 = arith.constant 32 : i32
    %126 = vector.broadcast %c32_i32_57 : i32 to vector<1x384xi32>
    %127 = arith.cmpi sge, %3, %126 : vector<1x384xi32>
    %cst_58 = arith.constant 0.000000e+00 : f32
    %128 = vector.broadcast %cst_58 : f32 to vector<1x384xf32>
    %129 = arith.select %127, %125, %128 : vector<1x384xi1>, vector<1x384xf32>
    %130 = arith.addf %124, %129 : vector<1x384xf32>
    %c64_i32_59 = arith.constant 64 : i32
    %131 = tpu.dynamic_rotate %130 by %c64_i32_59 dim 1 : vector<1x384xf32>, i32 -> vector<1x384xf32>
    %c64_i32_60 = arith.constant 64 : i32
    %132 = vector.broadcast %c64_i32_60 : i32 to vector<1x384xi32>
    %133 = arith.cmpi sge, %3, %132 : vector<1x384xi32>
    %cst_61 = arith.constant 0.000000e+00 : f32
    %134 = vector.broadcast %cst_61 : f32 to vector<1x384xf32>
    %135 = arith.select %133, %131, %134 : vector<1x384xi1>, vector<1x384xf32>
    %136 = arith.addf %130, %135 : vector<1x384xf32>
    %c128_i32_62 = arith.constant 128 : i32
    %137 = tpu.dynamic_rotate %136 by %c128_i32_62 dim 1 : vector<1x384xf32>, i32 -> vector<1x384xf32>
    %c128_i32_63 = arith.constant 128 : i32
    %138 = vector.broadcast %c128_i32_63 : i32 to vector<1x384xi32>
    %139 = arith.cmpi sge, %3, %138 : vector<1x384xi32>
    %cst_64 = arith.constant 0.000000e+00 : f32
    %140 = vector.broadcast %cst_64 : f32 to vector<1x384xf32>
    %141 = arith.select %139, %137, %140 : vector<1x384xi1>, vector<1x384xf32>
    %142 = arith.addf %136, %141 : vector<1x384xf32>
    %c256_i32_65 = arith.constant 256 : i32
    %143 = tpu.dynamic_rotate %142 by %c256_i32_65 dim 1 : vector<1x384xf32>, i32 -> vector<1x384xf32>
    %c256_i32_66 = arith.constant 256 : i32
    %144 = vector.broadcast %c256_i32_66 : i32 to vector<1x384xi32>
    %145 = arith.cmpi sge, %3, %144 : vector<1x384xi32>
    %cst_67 = arith.constant 0.000000e+00 : f32
    %146 = vector.broadcast %cst_67 : f32 to vector<1x384xf32>
    %147 = arith.select %145, %143, %146 : vector<1x384xi1>, vector<1x384xf32>
    %148 = arith.addf %142, %147 : vector<1x384xf32>
    %149 = vector.broadcast %30 : vector<1x1xf32> to vector<1x384xf32>
    %150 = arith.addf %148, %149 : vector<1x384xf32>
    %151 = arith.mulf %94, %15 : vector<1x384xf32>
    %cst_68 = arith.constant 2.000000e+00 : f32
    %152 = vector.broadcast %cst_68 : f32 to vector<1x384xf32>
    %153 = arith.mulf %152, %151 : vector<1x384xf32>
    %154 = arith.mulf %153, %94 : vector<1x384xf32>
    %155 = arith.subf %150, %154 : vector<1x384xf32>
    %156 = arith.mulf %155, %15 : vector<1x384xf32>
    %157 = arith.mulf %151, %151 : vector<1x384xf32>
    %158 = arith.addf %156, %157 : vector<1x384xf32>
    %cst_69 = arith.constant 9.99999993E-9 : f32
    %159 = vector.broadcast %cst_69 : f32 to vector<1x384xf32>
    %160 = arith.addf %158, %159 : vector<1x384xf32>
    %161 = math.rsqrt %160 : vector<1x384xf32>
    %162 = vector.broadcast %151 : vector<1x384xf32> to vector<4x384xf32>
    %163 = arith.subf %19, %162 : vector<4x384xf32>
    %164 = vector.broadcast %161 : vector<1x384xf32> to vector<4x384xf32>
    %165 = arith.mulf %163, %164 : vector<4x384xf32>
    %166 = vector.broadcast %16 : vector<4x1xf32> to vector<4x384xf32>
    %167 = arith.mulf %165, %166 : vector<4x384xf32>
    %168 = vector.broadcast %17 : vector<4x1xf32> to vector<4x384xf32>
    %169 = arith.addf %167, %168 : vector<4x384xf32>
    %c0_70 = arith.constant 0 : index
    %c0_71 = arith.constant 0 : index
    %c0_72 = arith.constant 0 : index
    %170 = vector.load %arg5[%c0_70, %c0_71, %c0_72] : memref<2x4x384xf32, #tpu.memory_space<vmem>>, vector<1x4x384xf32>
    %171 = vector.shape_cast %170 : vector<1x4x384xf32> to vector<4x384xf32>
    %172 = vector.shape_cast %169 : vector<4x384xf32> to vector<1x4x384xf32>
    tpu.vector_store %arg5[%c0_70, %c0_71, %c0_72], %172 {strides = array<i32>} : memref<2x4x384xf32, #tpu.memory_space<vmem>>, vector<1x4x384xf32>,
    %c1 = arith.constant 1 : index
    %c0_73 = arith.constant 0 : index
    %c0_74 = arith.constant 0 : index
    %173 = vector.load %arg2[%c1, %c0_73, %c0_74] : memref<2x4x384xf32, #tpu.memory_space<vmem>>, vector<1x4x384xf32>
    %174 = vector.shape_cast %173 : vector<1x4x384xf32> to vector<4x384xf32>
    %cst_75 = arith.constant dense<0.000000e+00> : vector<384xf32>
    %175 = vector.multi_reduction <add>, %174, %cst_75 [0] : vector<4x384xf32> to vector<384xf32>
    %176 = vector.shape_cast %175 : vector<384xf32> to vector<1x384xf32>
    %cst_76 = arith.constant 0.000000e+00 : f32
    %177 = vector.broadcast %cst_76 : f32 to vector<1x384xf32>
    %178 = arith.select %8, %176, %177 : vector<1x384xi1>, vector<1x384xf32>
    %179 = arith.mulf %174, %174 : vector<4x384xf32>
    %cst_77 = arith.constant dense<0.000000e+00> : vector<384xf32>
    %180 = vector.multi_reduction <add>, %179, %cst_77 [0] : vector<4x384xf32> to vector<384xf32>
    %181 = vector.shape_cast %180 : vector<384xf32> to vector<1x384xf32>
    %cst_78 = arith.constant 0.000000e+00 : f32
    %182 = vector.broadcast %cst_78 : f32 to vector<1x384xf32>
    %183 = arith.select %8, %181, %182 : vector<1x384xi1>, vector<1x384xf32>
    %c1_79 = arith.constant 1 : index
    %c0_80 = arith.constant 0 : index
    %184 = vector.load %arg6[%c1_79, %c0_80] : memref<2x1xf32, #tpu.memory_space<vmem>>, vector<1x1xf32>
    %c1_81 = arith.constant 1 : index
    %c0_82 = arith.constant 0 : index
    %185 = vector.load %arg7[%c1_81, %c0_82] : memref<2x1xf32, #tpu.memory_space<vmem>>, vector<1x1xf32>
    %cst_83 = arith.constant dense<0.000000e+00> : vector<1xf32>
    %186 = vector.multi_reduction <add>, %178, %cst_83 [1] : vector<1x384xf32> to vector<1xf32>
    %187 = vector.shape_cast %186 : vector<1xf32> to vector<1x1xf32>
    %188 = arith.addf %184, %187 : vector<1x1xf32>
    %c1_84 = arith.constant 1 : index
    %c0_85 = arith.constant 0 : index
    %189 = vector.load %arg6[%c1_84, %c0_85] : memref<2x1xf32, #tpu.memory_space<vmem>>, vector<1x1xf32>
    tpu.vector_store %arg6[%c1_84, %c0_85], %188 {strides = array<i32>} : memref<2x1xf32, #tpu.memory_space<vmem>>, vector<1x1xf32>,
    %cst_86 = arith.constant dense<0.000000e+00> : vector<1xf32>
    %190 = vector.multi_reduction <add>, %183, %cst_86 [1] : vector<1x384xf32> to vector<1xf32>
    %191 = vector.shape_cast %190 : vector<1xf32> to vector<1x1xf32>
    %192 = arith.addf %185, %191 : vector<1x1xf32>
    %c1_87 = arith.constant 1 : index
    %c0_88 = arith.constant 0 : index
    %193 = vector.load %arg7[%c1_87, %c0_88] : memref<2x1xf32, #tpu.memory_space<vmem>>, vector<1x1xf32>
    tpu.vector_store %arg7[%c1_87, %c0_88], %192 {strides = array<i32>} : memref<2x1xf32, #tpu.memory_space<vmem>>, vector<1x1xf32>,
    %c1_i32_89 = arith.constant 1 : i32
    %194 = tpu.dynamic_rotate %178 by %c1_i32_89 dim 1 : vector<1x384xf32>, i32 -> vector<1x384xf32>
    %c1_i32_90 = arith.constant 1 : i32
    %195 = vector.broadcast %c1_i32_90 : i32 to vector<1x384xi32>
    %196 = arith.cmpi sge, %3, %195 : vector<1x384xi32>
    %cst_91 = arith.constant 0.000000e+00 : f32
    %197 = vector.broadcast %cst_91 : f32 to vector<1x384xf32>
    %198 = arith.select %196, %194, %197 : vector<1x384xi1>, vector<1x384xf32>
    %199 = arith.addf %178, %198 : vector<1x384xf32>
    %c2_i32_92 = arith.constant 2 : i32
    %200 = tpu.dynamic_rotate %199 by %c2_i32_92 dim 1 : vector<1x384xf32>, i32 -> vector<1x384xf32>
    %c2_i32_93 = arith.constant 2 : i32
    %201 = vector.broadcast %c2_i32_93 : i32 to vector<1x384xi32>
    %202 = arith.cmpi sge, %3, %201 : vector<1x384xi32>
    %cst_94 = arith.constant 0.000000e+00 : f32
    %203 = vector.broadcast %cst_94 : f32 to vector<1x384xf32>
    %204 = arith.select %202, %200, %203 : vector<1x384xi1>, vector<1x384xf32>
    %205 = arith.addf %199, %204 : vector<1x384xf32>
    %c4_i32_95 = arith.constant 4 : i32
    %206 = tpu.dynamic_rotate %205 by %c4_i32_95 dim 1 : vector<1x384xf32>, i32 -> vector<1x384xf32>
    %c4_i32_96 = arith.constant 4 : i32
    %207 = vector.broadcast %c4_i32_96 : i32 to vector<1x384xi32>
    %208 = arith.cmpi sge, %3, %207 : vector<1x384xi32>
    %cst_97 = arith.constant 0.000000e+00 : f32
    %209 = vector.broadcast %cst_97 : f32 to vector<1x384xf32>
    %210 = arith.select %208, %206, %209 : vector<1x384xi1>, vector<1x384xf32>
    %211 = arith.addf %205, %210 : vector<1x384xf32>
    %c8_i32_98 = arith.constant 8 : i32
    %212 = tpu.dynamic_rotate %211 by %c8_i32_98 dim 1 : vector<1x384xf32>, i32 -> vector<1x384xf32>
    %c8_i32_99 = arith.constant 8 : i32
    %213 = vector.broadcast %c8_i32_99 : i32 to vector<1x384xi32>
    %214 = arith.cmpi sge, %3, %213 : vector<1x384xi32>
    %cst_100 = arith.constant 0.000000e+00 : f32
    %215 = vector.broadcast %cst_100 : f32 to vector<1x384xf32>
    %216 = arith.select %214, %212, %215 : vector<1x384xi1>, vector<1x384xf32>
    %217 = arith.addf %211, %216 : vector<1x384xf32>
    %c16_i32_101 = arith.constant 16 : i32
    %218 = tpu.dynamic_rotate %217 by %c16_i32_101 dim 1 : vector<1x384xf32>, i32 -> vector<1x384xf32>
    %c16_i32_102 = arith.constant 16 : i32
    %219 = vector.broadcast %c16_i32_102 : i32 to vector<1x384xi32>
    %220 = arith.cmpi sge, %3, %219 : vector<1x384xi32>
    %cst_103 = arith.constant 0.000000e+00 : f32
    %221 = vector.broadcast %cst_103 : f32 to vector<1x384xf32>
    %222 = arith.select %220, %218, %221 : vector<1x384xi1>, vector<1x384xf32>
    %223 = arith.addf %217, %222 : vector<1x384xf32>
    %c32_i32_104 = arith.constant 32 : i32
    %224 = tpu.dynamic_rotate %223 by %c32_i32_104 dim 1 : vector<1x384xf32>, i32 -> vector<1x384xf32>
    %c32_i32_105 = arith.constant 32 : i32
    %225 = vector.broadcast %c32_i32_105 : i32 to vector<1x384xi32>
    %226 = arith.cmpi sge, %3, %225 : vector<1x384xi32>
    %cst_106 = arith.constant 0.000000e+00 : f32
    %227 = vector.broadcast %cst_106 : f32 to vector<1x384xf32>
    %228 = arith.select %226, %224, %227 : vector<1x384xi1>, vector<1x384xf32>
    %229 = arith.addf %223, %228 : vector<1x384xf32>
    %c64_i32_107 = arith.constant 64 : i32
    %230 = tpu.dynamic_rotate %229 by %c64_i32_107 dim 1 : vector<1x384xf32>, i32 -> vector<1x384xf32>
    %c64_i32_108 = arith.constant 64 : i32
    %231 = vector.broadcast %c64_i32_108 : i32 to vector<1x384xi32>
    %232 = arith.cmpi sge, %3, %231 : vector<1x384xi32>
    %cst_109 = arith.constant 0.000000e+00 : f32
    %233 = vector.broadcast %cst_109 : f32 to vector<1x384xf32>
    %234 = arith.select %232, %230, %233 : vector<1x384xi1>, vector<1x384xf32>
    %235 = arith.addf %229, %234 : vector<1x384xf32>
    %c128_i32_110 = arith.constant 128 : i32
    %236 = tpu.dynamic_rotate %235 by %c128_i32_110 dim 1 : vector<1x384xf32>, i32 -> vector<1x384xf32>
    %c128_i32_111 = arith.constant 128 : i32
    %237 = vector.broadcast %c128_i32_111 : i32 to vector<1x384xi32>
    %238 = arith.cmpi sge, %3, %237 : vector<1x384xi32>
    %cst_112 = arith.constant 0.000000e+00 : f32
    %239 = vector.broadcast %cst_112 : f32 to vector<1x384xf32>
    %240 = arith.select %238, %236, %239 : vector<1x384xi1>, vector<1x384xf32>
    %241 = arith.addf %235, %240 : vector<1x384xf32>
    %c256_i32_113 = arith.constant 256 : i32
    %242 = tpu.dynamic_rotate %241 by %c256_i32_113 dim 1 : vector<1x384xf32>, i32 -> vector<1x384xf32>
    %c256_i32_114 = arith.constant 256 : i32
    %243 = vector.broadcast %c256_i32_114 : i32 to vector<1x384xi32>
    %244 = arith.cmpi sge, %3, %243 : vector<1x384xi32>
    %cst_115 = arith.constant 0.000000e+00 : f32
    %245 = vector.broadcast %cst_115 : f32 to vector<1x384xf32>
    %246 = arith.select %244, %242, %245 : vector<1x384xi1>, vector<1x384xf32>
    %247 = arith.addf %241, %246 : vector<1x384xf32>
    %248 = vector.broadcast %184 : vector<1x1xf32> to vector<1x384xf32>
    %249 = arith.addf %247, %248 : vector<1x384xf32>
    %c1_i32_116 = arith.constant 1 : i32
    %250 = tpu.dynamic_rotate %183 by %c1_i32_116 dim 1 : vector<1x384xf32>, i32 -> vector<1x384xf32>
    %c1_i32_117 = arith.constant 1 : i32
    %251 = vector.broadcast %c1_i32_117 : i32 to vector<1x384xi32>
    %252 = arith.cmpi sge, %3, %251 : vector<1x384xi32>
    %cst_118 = arith.constant 0.000000e+00 : f32
    %253 = vector.broadcast %cst_118 : f32 to vector<1x384xf32>
    %254 = arith.select %252, %250, %253 : vector<1x384xi1>, vector<1x384xf32>
    %255 = arith.addf %183, %254 : vector<1x384xf32>
    %c2_i32_119 = arith.constant 2 : i32
    %256 = tpu.dynamic_rotate %255 by %c2_i32_119 dim 1 : vector<1x384xf32>, i32 -> vector<1x384xf32>
    %c2_i32_120 = arith.constant 2 : i32
    %257 = vector.broadcast %c2_i32_120 : i32 to vector<1x384xi32>
    %258 = arith.cmpi sge, %3, %257 : vector<1x384xi32>
    %cst_121 = arith.constant 0.000000e+00 : f32
    %259 = vector.broadcast %cst_121 : f32 to vector<1x384xf32>
    %260 = arith.select %258, %256, %259 : vector<1x384xi1>, vector<1x384xf32>
    %261 = arith.addf %255, %260 : vector<1x384xf32>
    %c4_i32_122 = arith.constant 4 : i32
    %262 = tpu.dynamic_rotate %261 by %c4_i32_122 dim 1 : vector<1x384xf32>, i32 -> vector<1x384xf32>
    %c4_i32_123 = arith.constant 4 : i32
    %263 = vector.broadcast %c4_i32_123 : i32 to vector<1x384xi32>
    %264 = arith.cmpi sge, %3, %263 : vector<1x384xi32>
    %cst_124 = arith.constant 0.000000e+00 : f32
    %265 = vector.broadcast %cst_124 : f32 to vector<1x384xf32>
    %266 = arith.select %264, %262, %265 : vector<1x384xi1>, vector<1x384xf32>
    %267 = arith.addf %261, %266 : vector<1x384xf32>
    %c8_i32_125 = arith.constant 8 : i32
    %268 = tpu.dynamic_rotate %267 by %c8_i32_125 dim 1 : vector<1x384xf32>, i32 -> vector<1x384xf32>
    %c8_i32_126 = arith.constant 8 : i32
    %269 = vector.broadcast %c8_i32_126 : i32 to vector<1x384xi32>
    %270 = arith.cmpi sge, %3, %269 : vector<1x384xi32>
    %cst_127 = arith.constant 0.000000e+00 : f32
    %271 = vector.broadcast %cst_127 : f32 to vector<1x384xf32>
    %272 = arith.select %270, %268, %271 : vector<1x384xi1>, vector<1x384xf32>
    %273 = arith.addf %267, %272 : vector<1x384xf32>
    %c16_i32_128 = arith.constant 16 : i32
    %274 = tpu.dynamic_rotate %273 by %c16_i32_128 dim 1 : vector<1x384xf32>, i32 -> vector<1x384xf32>
    %c16_i32_129 = arith.constant 16 : i32
    %275 = vector.broadcast %c16_i32_129 : i32 to vector<1x384xi32>
    %276 = arith.cmpi sge, %3, %275 : vector<1x384xi32>
    %cst_130 = arith.constant 0.000000e+00 : f32
    %277 = vector.broadcast %cst_130 : f32 to vector<1x384xf32>
    %278 = arith.select %276, %274, %277 : vector<1x384xi1>, vector<1x384xf32>
    %279 = arith.addf %273, %278 : vector<1x384xf32>
    %c32_i32_131 = arith.constant 32 : i32
    %280 = tpu.dynamic_rotate %279 by %c32_i32_131 dim 1 : vector<1x384xf32>, i32 -> vector<1x384xf32>
    %c32_i32_132 = arith.constant 32 : i32
    %281 = vector.broadcast %c32_i32_132 : i32 to vector<1x384xi32>
    %282 = arith.cmpi sge, %3, %281 : vector<1x384xi32>
    %cst_133 = arith.constant 0.000000e+00 : f32
    %283 = vector.broadcast %cst_133 : f32 to vector<1x384xf32>
    %284 = arith.select %282, %280, %283 : vector<1x384xi1>, vector<1x384xf32>
    %285 = arith.addf %279, %284 : vector<1x384xf32>
    %c64_i32_134 = arith.constant 64 : i32
    %286 = tpu.dynamic_rotate %285 by %c64_i32_134 dim 1 : vector<1x384xf32>, i32 -> vector<1x384xf32>
    %c64_i32_135 = arith.constant 64 : i32
    %287 = vector.broadcast %c64_i32_135 : i32 to vector<1x384xi32>
    %288 = arith.cmpi sge, %3, %287 : vector<1x384xi32>
    %cst_136 = arith.constant 0.000000e+00 : f32
    %289 = vector.broadcast %cst_136 : f32 to vector<1x384xf32>
    %290 = arith.select %288, %286, %289 : vector<1x384xi1>, vector<1x384xf32>
    %291 = arith.addf %285, %290 : vector<1x384xf32>
    %c128_i32_137 = arith.constant 128 : i32
    %292 = tpu.dynamic_rotate %291 by %c128_i32_137 dim 1 : vector<1x384xf32>, i32 -> vector<1x384xf32>
    %c128_i32_138 = arith.constant 128 : i32
    %293 = vector.broadcast %c128_i32_138 : i32 to vector<1x384xi32>
    %294 = arith.cmpi sge, %3, %293 : vector<1x384xi32>
    %cst_139 = arith.constant 0.000000e+00 : f32
    %295 = vector.broadcast %cst_139 : f32 to vector<1x384xf32>
    %296 = arith.select %294, %292, %295 : vector<1x384xi1>, vector<1x384xf32>
    %297 = arith.addf %291, %296 : vector<1x384xf32>
    %c256_i32_140 = arith.constant 256 : i32
    %298 = tpu.dynamic_rotate %297 by %c256_i32_140 dim 1 : vector<1x384xf32>, i32 -> vector<1x384xf32>
    %c256_i32_141 = arith.constant 256 : i32
    %299 = vector.broadcast %c256_i32_141 : i32 to vector<1x384xi32>
    %300 = arith.cmpi sge, %3, %299 : vector<1x384xi32>
    %cst_142 = arith.constant 0.000000e+00 : f32
    %301 = vector.broadcast %cst_142 : f32 to vector<1x384xf32>
    %302 = arith.select %300, %298, %301 : vector<1x384xi1>, vector<1x384xf32>
    %303 = arith.addf %297, %302 : vector<1x384xf32>
    %304 = vector.broadcast %185 : vector<1x1xf32> to vector<1x384xf32>
    %305 = arith.addf %303, %304 : vector<1x384xf32>
    %306 = arith.mulf %249, %15 : vector<1x384xf32>
    %cst_143 = arith.constant 2.000000e+00 : f32
    %307 = vector.broadcast %cst_143 : f32 to vector<1x384xf32>
    %308 = arith.mulf %307, %306 : vector<1x384xf32>
    %309 = arith.mulf %308, %249 : vector<1x384xf32>
    %310 = arith.subf %305, %309 : vector<1x384xf32>
    %311 = arith.mulf %310, %15 : vector<1x384xf32>
    %312 = arith.mulf %306, %306 : vector<1x384xf32>
    %313 = arith.addf %311, %312 : vector<1x384xf32>
    %cst_144 = arith.constant 9.99999993E-9 : f32
    %314 = vector.broadcast %cst_144 : f32 to vector<1x384xf32>
    %315 = arith.addf %313, %314 : vector<1x384xf32>
    %316 = math.rsqrt %315 : vector<1x384xf32>
    %317 = vector.broadcast %306 : vector<1x384xf32> to vector<4x384xf32>
    %318 = arith.subf %174, %317 : vector<4x384xf32>
    %319 = vector.broadcast %316 : vector<1x384xf32> to vector<4x384xf32>
    %320 = arith.mulf %318, %319 : vector<4x384xf32>
    %321 = vector.broadcast %16 : vector<4x1xf32> to vector<4x384xf32>
    %322 = arith.mulf %320, %321 : vector<4x384xf32>
    %323 = vector.broadcast %17 : vector<4x1xf32> to vector<4x384xf32>
    %324 = arith.addf %322, %323 : vector<4x384xf32>
    %c1_145 = arith.constant 1 : index
    %c0_146 = arith.constant 0 : index
    %c0_147 = arith.constant 0 : index
    %325 = vector.load %arg5[%c1_145, %c0_146, %c0_147] : memref<2x4x384xf32, #tpu.memory_space<vmem>>, vector<1x4x384xf32>
    %326 = vector.shape_cast %325 : vector<1x4x384xf32> to vector<4x384xf32>
    %327 = vector.shape_cast %324 : vector<4x384xf32> to vector<1x4x384xf32>
    tpu.vector_store %arg5[%c1_145, %c0_146, %c0_147], %327 {strides = array<i32>} : memref<2x4x384xf32, #tpu.memory_space<vmem>>, vector<1x4x384xf32>,
    return
  }
  func.func @transform_0(%arg0: i32, %arg1: i32) -> (i32, i32, i32) {
    %c0_i32 = arith.constant 0 : i32
    %c0_i32_0 = arith.constant 0 : i32
    return %arg0, %c0_i32, %arg1 : i32, i32, i32
  }
  func.func @transform_1(%arg0: i32, %arg1: i32) -> (i32, i32) {
    %c0_i32 = arith.constant 0 : i32
    %c0_i32_0 = arith.constant 0 : i32
    %c0_i32_1 = arith.constant 0 : i32
    return %c0_i32, %c0_i32_0 : i32, i32
  }
  func.func @transform_2(%arg0: i32, %arg1: i32) -> (i32, i32) {
    %c0_i32 = arith.constant 0 : i32
    %c0_i32_0 = arith.constant 0 : i32
    %c0_i32_1 = arith.constant 0 : i32
    return %c0_i32, %c0_i32_0 : i32, i32
  }
  func.func @transform_3(%arg0: i32, %arg1: i32) -> (i32, i32, i32) {
    %c0_i32 = arith.constant 0 : i32
    %c0_i32_0 = arith.constant 0 : i32
    return %arg0, %c0_i32, %arg1 : i32, i32, i32
  }
}

</mosaic_0001>

<llo_original>
// kernel: cln_forward.1
$region0: #{cln_forward.1}
  #allocation0 [shape = 'u32[]', space=smem, size = 0x4, offset = 0x4, fixed_abs, tag = 'smem constant byte address 0x4 - core index']
  #allocation1 [shape = 'u32[144,128]{1,0:T(1,128)}', space=vmem, size = 0x12000, scoped, tag = 'internal scratch']
  #allocation2 [shape = 'f32[2,1]{1,0:T(2,128)}', space=vmem, size = 0x400, scoped, tag = 'scratch operand']
  #allocation3 [shape = 'f32[2,1]{1,0:T(2,128)}', space=vmem, size = 0x400, scoped, tag = 'scratch operand']
  %s0 = inlined_call_operand.hbm [shape: f32[2,4,300], index: 0, kind: input, shape index: {}]
  %s1 = inlined_call_operand.vmem [shape: f32[4,1], index: 1, kind: input, shape index: {}]
  %s2 = inlined_call_operand.vmem [shape: f32[4,1], index: 2, kind: input, shape index: {}]
  %s3 = inlined_call_operand.hbm [shape: f32[2,4,300], index: 3, kind: output, shape index: {}]
  %s4 = sld [smem:[#allocation0]]
  $region30: #{cln_forward.1} parent=0
    _
  %s6 = ssub.s32 1, %s4
  %s7 = scalar_select 0, %s6, %s4
  $region1: #{cln_forward.1} parent=0
    #allocation4 [shape = 'u8[12288]{0}', space=vmem, size = 0x3000, scoped, tag = 'input window, operand 0, single buffered']
    #allocation5 [shape = 's32[1]{0}', space=sflag, size = 0x4, scoped, tag = 'scoped memory for cln_forward.1']
    #allocation6 [shape = 's32[1]{0}', space=sflag, size = 0x4, scoped, tag = 'scoped memory for cln_forward.1']
    #allocation7 [shape = 'u8[12288]{0}', space=vmem, size = 0x3000, scoped, tag = 'output window, operand 0, single buffered']
    %8 = vsyncpa [#allocation5], 0
    %9 = vsyncpa [#allocation6], 0
    // Predicated region
    $region2: #{cln_forward.1} parent=1 // pred_check
      _
    $region3: #{cln_forward.1} parent=1 // pred_check_branch
      %11 = sbr.rel (0) target = $region5
    $region4: #{cln_forward.1} parent=1 // pred_region
      %s13 = ssub.s32 384, 384
      %14 = vsyncadd [#allocation5], %s13
      %s15 = sshll.u32 [#allocation4], 4
      %s16 = int_to_ptr.vmem [resolvable:$true] %s15
      %21 = dma.hbm_to_vmem [thread:$0]  %s0, 384, %s16, [#allocation5], 192, 192, 12
    $region5: #{cln_forward.1} parent=1 // pred_fallthru
      _
    // Predicated region
    $region6: #{cln_forward.1} parent=1 // pred_check
      _
    $region7: #{cln_forward.1} parent=1 // pred_check_branch
      %23 = sbr.rel (0) target = $region9
    $region8: #{cln_forward.1} parent=1 // pred_region
      _
    $region9: #{cln_forward.1} parent=1 // pred_fallthru
      _
    // Predicated region
    $region10: #{cln_forward.1} parent=1 // pred_check
      _
    $region11: #{cln_forward.1} parent=1 // pred_check_branch
      %25 = sbr.rel (0) target = $region13
    $region12: #{cln_forward.1} parent=1 // pred_region
      _
    $region13: #{cln_forward.1} parent=1 // pred_fallthru
      _
    // Predicated region
    $region14: #{cln_forward.1} parent=1 // pred_check
      _
    $region15: #{cln_forward.1} parent=1 // pred_check_branch
      %27 = sbr.rel (0) target = $region17
    $region16: #{cln_forward.1} parent=1 // pred_region
      %28 = dma.done [#allocation5], 384
    $region17: #{cln_forward.1} parent=1 // pred_fallthru
      _
    %p29 = scmp.eq.s32.totalorder 0, 0
    // Predicated region
    $region18: #{cln_forward.1} parent=1 // pred_check
      %p30 = pneg %p29
    $region19: #{cln_forward.1} parent=1 // pred_check_branch
      %32 = sbr.rel (%p30) target = $region21
    $region20: #{cln_forward.1} parent=1 // pred_region
      %vm33 = vcmask 1024
      %34 = vst.msk [vmem:[#allocation2] sm:$0x3] %vm33, 0.0
      %35 = vst.msk [vmem:[#allocation3] sm:$0x3] %vm33, 0.0
    $region21: #{cln_forward.1} parent=1 // pred_fallthru
      _
    %v36 = vlaneseq
    %v37 = vand.u32 %v36, 127
    %v38 = vadd.s32 %v37, 128
    %v39 = vadd.s32 %v37, 256
    %s40 = smul.u32 0, 384
    %v41 = vstv %s40
    %v42 = vadd.s32 %v41, %v37
    %v43 = vadd.s32 %v41, %v38
    %v44 = vadd.s32 %v41, %v39
    %vm45 = vcmp.lt.s32.totalorder %v42, 300
    %vm46 = vcmp.lt.s32.totalorder %v43, 300
    %vm47 = vcmp.lt.s32.totalorder %v44, 300
    %v48 = vadd.s32 %v42, 1
    %v49 = vadd.s32 %v43, 1
    %v50 = vadd.s32 %v44, 1
    %v51 = vcvt.s32.f32 %v48
    %v52 = vcvt.s32.f32 %v49
    %v53 = vcvt.s32.f32 %v50
    %v54 = vmul.f32 %v51, 4.0
    %v55 = vmul.f32 %v52, 4.0
    %v56 = vmul.f32 %v53, 4.0
    %v57 = vrcp.pop %v54
    %v58 = vmul.f32 1.0, %v57
    %v59 = vrcp.pop %v55
    %v60 = vmul.f32 1.0, %v59
    %v61 = vrcp.pop %v56
    %v62 = vmul.f32 1.0, %v61
    %v63 = vld [vmem:[%s1] sm:$0xf]
    %v64 = vld [vmem:[%s2] sm:$0xf]
    %v65 = vld [vmem:[#allocation4] sm:$0xff]
    %v66 = vld [vmem:[#allocation4 + $0x8] sm:$0xf]
    %v68 = vcombine.high %v65, %v65
    %vm70 = vcmask 1043456
    %v71 = vsel %vm70, %v65, 0.0
    %v72 = vrot.slane %v71, 4
    %v73 = vadd.f32 %v71, %v72
    %v74 = vrot.slane %v73, 2
    %v75 = vadd.f32 %v73, %v74
    %v76 = vrot.slane %v75, 1
    %v77 = vadd.f32 %v75, %v76
    %v78 = vsel %vm70, %v68, 0.0
    %v79 = vrot.slane %v78, 4
    %v80 = vadd.f32 %v78, %v79
    %v81 = vrot.slane %v80, 2
    %v82 = vadd.f32 %v80, %v81
    %v83 = vrot.slane %v82, 1
    %v84 = vadd.f32 %v82, %v83
    %v85 = vsel %vm70, %v66, 0.0
    %v86 = vrot.slane %v85, 4
    %v87 = vadd.f32 %v85, %v86
    %v88 = vrot.slane %v87, 2
    %v89 = vadd.f32 %v87, %v88
    %v90 = vrot.slane %v89, 1
    %v91 = vadd.f32 %v89, %v90
    %v92 = vsel %vm45, %v77, 0.0
    %v93 = vsel %vm46, %v84, 0.0
    %v94 = vsel %vm47, %v91, 0.0
    %v95 = vmul.f32 %v65, %v65
    %v96 = vmul.f32 %v66, %v66
    %v98 = vcombine.high %v95, %v95
    %v100 = vsel %vm70, %v95, 0.0
    %v101 = vrot.slane %v100, 4
    %v102 = vadd.f32 %v100, %v101
    %v103 = vrot.slane %v102, 2
    %v104 = vadd.f32 %v102, %v103
    %v105 = vrot.slane %v104, 1
    %v106 = vadd.f32 %v104, %v105
    %v107 = vsel %vm70, %v98, 0.0
    %v108 = vrot.slane %v107, 4
    %v109 = vadd.f32 %v107, %v108
    %v110 = vrot.slane %v109, 2
    %v111 = vadd.f32 %v109, %v110
    %v112 = vrot.slane %v111, 1
    %v113 = vadd.f32 %v111, %v112
    %v114 = vsel %vm70, %v96, 0.0
    %v115 = vrot.slane %v114, 4
    %v116 = vadd.f32 %v114, %v115
    %v117 = vrot.slane %v116, 2
    %v118 = vadd.f32 %v116, %v117
    %v119 = vrot.slane %v118, 1
    %v120 = vadd.f32 %v118, %v119
    %v121 = vsel %vm45, %v106, 0.0
    %v122 = vsel %vm46, %v113, 0.0
    %v123 = vsel %vm47, %v120, 0.0
    %v124 = vld [vmem:[#allocation2] sm:$0x1]
    %v125 = vld [vmem:[#allocation3] sm:$0x1]
    %v126 = vadd.f32 %v92, %v93
    %v127 = vadd.f32 %v126, %v94
    %128 = vadd.xlane.f32.xlu0 %v127
    %v129 = vpop.xlane.xlu0 %128
    %v130 = vadd.f32 %v124, %v129
    %vm131 = vcmask 0
    %132 = vst.msk [vmem:[#allocation2] sm:$0x1] %vm131, %v130
    %v133 = vadd.f32 %v121, %v122
    %v134 = vadd.f32 %v133, %v123
    %135 = vadd.xlane.f32.xlu0 %v134
    %v136 = vpop.xlane.xlu0 %135
    %v137 = vadd.f32 %v125, %v136
    %138 = vst.msk [vmem:[#allocation3] sm:$0x1] %vm131, %v137
    %139 = vrot.lane.b32.xlu0 %v92, 1
    %v140 = vpop.permute.xlu0 %139
    %141 = vrot.lane.b32.xlu0 %v93, 1
    %v142 = vpop.permute.xlu0 %141
    %143 = vrot.lane.b32.xlu0 %v94, 1
    %v144 = vpop.permute.xlu0 %143
    %vm145 = vcmp.lt.s32.totalorder %v37, 1
    %v146 = vsel %vm145, %v142, %v144
    %v147 = vsel %vm145, %v140, %v142
    %v148 = vsel %vm145, %v144, %v140
    %vm149 = vcmp.ge.s32.totalorder %v37, 1
    %vm150 = vcmp.ge.s32.totalorder %v38, 1
    %vm151 = vcmp.ge.s32.totalorder %v39, 1
    %v152 = vsel %vm149, %v148, 0.0
    %v153 = vsel %vm150, %v147, 0.0
    %v154 = vsel %vm151, %v146, 0.0
    %v155 = vadd.f32 %v92, %v152
    %v156 = vadd.f32 %v93, %v153
    %v157 = vadd.f32 %v94, %v154
    %158 = vrot.lane.b32.xlu0 %v155, 2
    %v159 = vpop.permute.xlu0 %158
    %160 = vrot.lane.b32.xlu0 %v156, 2
    %v161 = vpop.permute.xlu0 %160
    %162 = vrot.lane.b32.xlu0 %v157, 2
    %v163 = vpop.permute.xlu0 %162
    %vm164 = vcmp.lt.s32.totalorder %v37, 2
    %v165 = vsel %vm164, %v161, %v163
    %v166 = vsel %vm164, %v159, %v161
    %v167 = vsel %vm164, %v163, %v159
    %vm168 = vcmp.ge.s32.totalorder %v37, 2
    %vm169 = vcmp.ge.s32.totalorder %v38, 2
    %vm170 = vcmp.ge.s32.totalorder %v39, 2
    %v171 = vsel %vm168, %v167, 0.0
    %v172 = vsel %vm169, %v166, 0.0
    %v173 = vsel %vm170, %v165, 0.0
    %v174 = vadd.f32 %v155, %v171
    %v175 = vadd.f32 %v156, %v172
    %v176 = vadd.f32 %v157, %v173
    %177 = vrot.lane.b32.xlu0 %v174, 4
    %v178 = vpop.permute.xlu0 %177
    %179 = vrot.lane.b32.xlu0 %v175, 4
    %v180 = vpop.permute.xlu0 %179
    %181 = vrot.lane.b32.xlu0 %v176, 4
    %v182 = vpop.permute.xlu0 %181
    %vm183 = vcmp.lt.s32.totalorder %v37, 4
    %v184 = vsel %vm183, %v180, %v182
    %v185 = vsel %vm183, %v178, %v180
    %v186 = vsel %vm183, %v182, %v178
    %vm187 = vcmp.ge.s32.totalorder %v37, 4
    %vm188 = vcmp.ge.s32.totalorder %v38, 4
    %vm189 = vcmp.ge.s32.totalorder %v39, 4
    %v190 = vsel %vm187, %v186, 0.0
    %v191 = vsel %vm188, %v185, 0.0
    %v192 = vsel %vm189, %v184, 0.0
    %v193 = vadd.f32 %v174, %v190
    %v194 = vadd.f32 %v175, %v191
    %v195 = vadd.f32 %v176, %v192
    %196 = vrot.lane.b32.xlu0 %v193, 8
    %v197 = vpop.permute.xlu0 %196
    %198 = vrot.lane.b32.xlu0 %v194, 8
    %v199 = vpop.permute.xlu0 %198
    %200 = vrot.lane.b32.xlu0 %v195, 8
    %v201 = vpop.permute.xlu0 %200
    %vm202 = vcmp.lt.s32.totalorder %v37, 8
    %v203 = vsel %vm202, %v199, %v201
    %v204 = vsel %vm202, %v197, %v199
    %v205 = vsel %vm202, %v201, %v197
    %vm206 = vcmp.ge.s32.totalorder %v37, 8
    %vm207 = vcmp.ge.s32.totalorder %v38, 8
    %vm208 = vcmp.ge.s32.totalorder %v39, 8
    %v209 = vsel %vm206, %v205, 0.0
    %v210 = vsel %vm207, %v204, 0.0
    %v211 = vsel %vm208, %v203, 0.0
    %v212 = vadd.f32 %v193, %v209
    %v213 = vadd.f32 %v194, %v210
    %v214 = vadd.f32 %v195, %v211
    %215 = vrot.lane.b32.xlu0 %v212, 16
    %v216 = vpop.permute.xlu0 %215
    %217 = vrot.lane.b32.xlu0 %v213, 16
    %v218 = vpop.permute.xlu0 %217
    %219 = vrot.lane.b32.xlu0 %v214, 16
    %v220 = vpop.permute.xlu0 %219
    %vm221 = vcmp.lt.s32.totalorder %v37, 16
    %v222 = vsel %vm221, %v218, %v220
    %v223 = vsel %vm221, %v216, %v218
    %v224 = vsel %vm221, %v220, %v216
    %vm225 = vcmp.ge.s32.totalorder %v37, 16
    %vm226 = vcmp.ge.s32.totalorder %v38, 16
    %vm227 = vcmp.ge.s32.totalorder %v39, 16
    %v228 = vsel %vm225, %v224, 0.0
    %v229 = vsel %vm226, %v223, 0.0
    %v230 = vsel %vm227, %v222, 0.0
    %v231 = vadd.f32 %v212, %v228
    %v232 = vadd.f32 %v213, %v229
    %v233 = vadd.f32 %v214, %v230
    %234 = vrot.lane.b32.xlu0 %v231, 32
    %v235 = vpop.permute.xlu0 %234
    %236 = vrot.lane.b32.xlu0 %v232, 32
    %v237 = vpop.permute.xlu0 %236
    %238 = vrot.lane.b32.xlu0 %v233, 32
    %v239 = vpop.permute.xlu0 %238
    %vm240 = vcmp.lt.s32.totalorder %v37, 32
    %v241 = vsel %vm240, %v237, %v239
    %v242 = vsel %vm240, %v235, %v237
    %v243 = vsel %vm240, %v239, %v235
    %vm244 = vcmp.ge.s32.totalorder %v37, 32
    %vm245 = vcmp.ge.s32.totalorder %v38, 32
    %vm246 = vcmp.ge.s32.totalorder %v39, 32
    %v247 = vsel %vm244, %v243, 0.0
    %v248 = vsel %vm245, %v242, 0.0
    %v249 = vsel %vm246, %v241, 0.0
    %v250 = vadd.f32 %v231, %v247
    %v251 = vadd.f32 %v232, %v248
    %v252 = vadd.f32 %v233, %v249
    %253 = vrot.lane.b32.xlu0 %v250, 64
    %v254 = vpop.permute.xlu0 %253
    %255 = vrot.lane.b32.xlu0 %v251, 64
    %v256 = vpop.permute.xlu0 %255
    %257 = vrot.lane.b32.xlu0 %v252, 64
    %v258 = vpop.permute.xlu0 %257
    %vm259 = vcmp.lt.s32.totalorder %v37, 64
    %v260 = vsel %vm259, %v256, %v258
    %v261 = vsel %vm259, %v254, %v256
    %v262 = vsel %vm259, %v258, %v254
    %vm263 = vcmp.ge.s32.totalorder %v37, 64
    %vm264 = vcmp.ge.s32.totalorder %v38, 64
    %vm265 = vcmp.ge.s32.totalorder %v39, 64
    %v266 = vsel %vm263, %v262, 0.0
    %v267 = vsel %vm264, %v261, 0.0
    %v268 = vsel %vm265, %v260, 0.0
    %v269 = vadd.f32 %v250, %v266
    %v270 = vadd.f32 %v251, %v267
    %v271 = vadd.f32 %v252, %v268
    %vm272 = vcmp.ge.s32.totalorder %v37, 128
    %vm273 = vcmp.ge.s32.totalorder %v38, 128
    %vm274 = vcmp.ge.s32.totalorder %v39, 128
    %v275 = vsel %vm272, %v271, 0.0
    %v276 = vsel %vm273, %v269, 0.0
    %v277 = vsel %vm274, %v270, 0.0
    %v278 = vadd.f32 %v269, %v275
    %v279 = vadd.f32 %v270, %v276
    %v280 = vadd.f32 %v271, %v277
    %vm281 = vcmp.ge.s32.totalorder %v37, 256
    %vm282 = vcmp.ge.s32.totalorder %v38, 256
    %vm283 = vcmp.ge.s32.totalorder %v39, 256
    %v284 = vsel %vm281, %v279, 0.0
    %v285 = vsel %vm282, %v280, 0.0
    %v286 = vsel %vm283, %v278, 0.0
    %v287 = vadd.f32 %v278, %v284
    %v288 = vadd.f32 %v279, %v285
    %v289 = vadd.f32 %v280, %v286
    %291 = vset.pattern.permute.xlu0 0
    %292 = vperm.xlu0 %291, %v124
    %v293 = vpop.permute.xlu0 %292
    %v295 = vadd.f32 %v287, %v293
    %v296 = vadd.f32 %v288, %v293
    %v297 = vadd.f32 %v289, %v293
    %298 = vrot.lane.b32.xlu0 %v121, 1
    %v299 = vpop.permute.xlu0 %298
    %300 = vrot.lane.b32.xlu0 %v122, 1
    %v301 = vpop.permute.xlu0 %300
    %302 = vrot.lane.b32.xlu0 %v123, 1
    %v303 = vpop.permute.xlu0 %302
    %v304 = vsel %vm145, %v301, %v303
    %v305 = vsel %vm145, %v299, %v301
    %v306 = vsel %vm145, %v303, %v299
    %v307 = vsel %vm149, %v306, 0.0
    %v308 = vsel %vm150, %v305, 0.0
    %v309 = vsel %vm151, %v304, 0.0
    %v310 = vadd.f32 %v121, %v307
    %v311 = vadd.f32 %v122, %v308
    %v312 = vadd.f32 %v123, %v309
    %313 = vrot.lane.b32.xlu0 %v310, 2
    %v314 = vpop.permute.xlu0 %313
    %315 = vrot.lane.b32.xlu0 %v311, 2
    %v316 = vpop.permute.xlu0 %315
    %317 = vrot.lane.b32.xlu0 %v312, 2
    %v318 = vpop.permute.xlu0 %317
    %v319 = vsel %vm164, %v316, %v318
    %v320 = vsel %vm164, %v314, %v316
    %v321 = vsel %vm164, %v318, %v314
    %v322 = vsel %vm168, %v321, 0.0
    %v323 = vsel %vm169, %v320, 0.0
    %v324 = vsel %vm170, %v319, 0.0
    %v325 = vadd.f32 %v310, %v322
    %v326 = vadd.f32 %v311, %v323
    %v327 = vadd.f32 %v312, %v324
    %328 = vrot.lane.b32.xlu0 %v325, 4
    %v329 = vpop.permute.xlu0 %328
    %330 = vrot.lane.b32.xlu0 %v326, 4
    %v331 = vpop.permute.xlu0 %330
    %332 = vrot.lane.b32.xlu0 %v327, 4
    %v333 = vpop.permute.xlu0 %332
    %v334 = vsel %vm183, %v331, %v333
    %v335 = vsel %vm183, %v329, %v331
    %v336 = vsel %vm183, %v333, %v329
    %v337 = vsel %vm187, %v336, 0.0
    %v338 = vsel %vm188, %v335, 0.0
    %v339 = vsel %vm189, %v334, 0.0
    %v340 = vadd.f32 %v325, %v337
    %v341 = vadd.f32 %v326, %v338
    %v342 = vadd.f32 %v327, %v339
    %343 = vrot.lane.b32.xlu0 %v340, 8
    %v344 = vpop.permute.xlu0 %343
    %345 = vrot.lane.b32.xlu0 %v341, 8
    %v346 = vpop.permute.xlu0 %345
    %347 = vrot.lane.b32.xlu0 %v342, 8
    %v348 = vpop.permute.xlu0 %347
    %v349 = vsel %vm202, %v346, %v348
    %v350 = vsel %vm202, %v344, %v346
    %v351 = vsel %vm202, %v348, %v344
    %v352 = vsel %vm206, %v351, 0.0
    %v353 = vsel %vm207, %v350, 0.0
    %v354 = vsel %vm208, %v349, 0.0
    %v355 = vadd.f32 %v340, %v352
    %v356 = vadd.f32 %v341, %v353
    %v357 = vadd.f32 %v342, %v354
    %358 = vrot.lane.b32.xlu0 %v355, 16
    %v359 = vpop.permute.xlu0 %358
    %360 = vrot.lane.b32.xlu0 %v356, 16
    %v361 = vpop.permute.xlu0 %360
    %362 = vrot.lane.b32.xlu0 %v357, 16
    %v363 = vpop.permute.xlu0 %362
    %v364 = vsel %vm221, %v361, %v363
    %v365 = vsel %vm221, %v359, %v361
    %v366 = vsel %vm221, %v363, %v359
    %v367 = vsel %vm225, %v366, 0.0
    %v368 = vsel %vm226, %v365, 0.0
    %v369 = vsel %vm227, %v364, 0.0
    %v370 = vadd.f32 %v355, %v367
    %v371 = vadd.f32 %v356, %v368
    %v372 = vadd.f32 %v357, %v369
    %373 = vrot.lane.b32.xlu0 %v370, 32
    %v374 = vpop.permute.xlu0 %373
    %375 = vrot.lane.b32.xlu0 %v371, 32
    %v376 = vpop.permute.xlu0 %375
    %377 = vrot.lane.b32.xlu0 %v372, 32
    %v378 = vpop.permute.xlu0 %377
    %v379 = vsel %vm240, %v376, %v378
    %v380 = vsel %vm240, %v374, %v376
    %v381 = vsel %vm240, %v378, %v374
    %v382 = vsel %vm244, %v381, 0.0
    %v383 = vsel %vm245, %v380, 0.0
    %v384 = vsel %vm246, %v379, 0.0
    %v385 = vadd.f32 %v370, %v382
    %v386 = vadd.f32 %v371, %v383
    %v387 = vadd.f32 %v372, %v384
    %388 = vrot.lane.b32.xlu0 %v385, 64
    %v389 = vpop.permute.xlu0 %388
    %390 = vrot.lane.b32.xlu0 %v386, 64
    %v391 = vpop.permute.xlu0 %390
    %392 = vrot.lane.b32.xlu0 %v387, 64
    %v393 = vpop.permute.xlu0 %392
    %v394 = vsel %vm259, %v391, %v393
    %v395 = vsel %vm259, %v389, %v391
    %v396 = vsel %vm259, %v393, %v389
    %v397 = vsel %vm263, %v396, 0.0
    %v398 = vsel %vm264, %v395, 0.0
    %v399 = vsel %vm265, %v394, 0.0
    %v400 = vadd.f32 %v385, %v397
    %v401 = vadd.f32 %v386, %v398
    %v402 = vadd.f32 %v387, %v399
    %v403 = vsel %vm272, %v402, 0.0
    %v404 = vsel %vm273, %v400, 0.0
    %v405 = vsel %vm274, %v401, 0.0
    %v406 = vadd.f32 %v400, %v403
    %v407 = vadd.f32 %v401, %v404
    %v408 = vadd.f32 %v402, %v405
    %v409 = vsel %vm281, %v407, 0.0
    %v410 = vsel %vm282, %v408, 0.0
    %v411 = vsel %vm283, %v406, 0.0
    %v412 = vadd.f32 %v406, %v409
    %v413 = vadd.f32 %v407, %v410
    %v414 = vadd.f32 %v408, %v411
    %416 = vset.pattern.permute.xlu0 0
    %417 = vperm.xlu0 %416, %v125
    %v418 = vpop.permute.xlu0 %417
    %v420 = vadd.f32 %v412, %v418
    %v421 = vadd.f32 %v413, %v418
    %v422 = vadd.f32 %v414, %v418
    %v423 = vmul.f32 %v295, %v58
    %v424 = vmul.f32 %v296, %v60
    %v425 = vmul.f32 %v297, %v62
    %v426 = vmul.f32 %v423, 2.0
    %v427 = vmul.f32 %v424, 2.0
    %v428 = vmul.f32 %v425, 2.0
    %v429 = vmul.f32 %v426, %v295
    %v430 = vmul.f32 %v427, %v296
    %v431 = vmul.f32 %v428, %v297
    %v432 = vsub.f32 %v420, %v429
    %v433 = vsub.f32 %v421, %v430
    %v434 = vsub.f32 %v422, %v431
    %v435 = vmul.f32 %v432, %v58
    %v436 = vmul.f32 %v433, %v60
    %v437 = vmul.f32 %v434, %v62
    %v438 = vmul.f32 %v423, %v423
    %v439 = vmul.f32 %v424, %v424
    %v440 = vmul.f32 %v425, %v425
    %v441 = vadd.f32 %v435, %v438
    %v442 = vadd.f32 %v436, %v439
    %v443 = vadd.f32 %v437, %v440
    %v444 = vadd.f32 %v441, 1e-08
    %v445 = vadd.f32 %v442, 1e-08
    %v446 = vadd.f32 %v443, 1e-08
    %v447 = vrsqrt.pop %v444
    %v448 = vrsqrt.pop %v445
    %v449 = vrsqrt.pop %v446
    %v450 = vlaneseq
    %v451 = vshrl.u32 %v450, 7
    %v452 = vsub.s32 0, %v451
    %v453 = vrot.slane %v423, %v452
    %v454 = vlaneseq
    %v455 = vshrl.u32 %v454, 7
    %v456 = vsub.s32 0, %v455
    %v457 = vrot.slane %v424, %v456
    %v458 = vlaneseq
    %v459 = vshrl.u32 %v458, 7
    %v460 = vsub.s32 0, %v459
    %v461 = vrot.slane %v425, %v460
    %v464 = vcombine.low %v453, %v457
    %v466 = vsub.f32 %v65, %v464
    %v467 = vsub.f32 %v66, %v461
    %v468 = vlaneseq
    %v469 = vshrl.u32 %v468, 7
    %v470 = vsub.s32 0, %v469
    %v471 = vrot.slane %v447, %v470
    %v472 = vlaneseq
    %v473 = vshrl.u32 %v472, 7
    %v474 = vsub.s32 0, %v473
    %v475 = vrot.slane %v448, %v474
    %v476 = vlaneseq
    %v477 = vshrl.u32 %v476, 7
    %v478 = vsub.s32 0, %v477
    %v479 = vrot.slane %v449, %v478
    %v482 = vcombine.low %v471, %v475
    %v484 = vmul.f32 %v466, %v482
    %v485 = vmul.f32 %v467, %v479
    %487 = vset.pattern.permute.xlu0 0
    %488 = vperm.xlu0 %487, %v63
    %v489 = vpop.permute.xlu0 %488
    %v491 = vunpack.c.l.s4 839922192
    %v492 = vunpack.c.0.s8 %v491
    %v493 = vlaneseq
    %v494 = vshrl.u32 %v493, 7
    %v495 = vsub.s32 %v492, %v494
    %v496 = vrot.slane %v489, %v495
    %v498 = vmul.f32 %v484, %v496
    %v499 = vmul.f32 %v485, %v496
    %501 = vset.pattern.permute.xlu0 0
    %502 = vperm.xlu0 %501, %v64
    %v503 = vpop.permute.xlu0 %502
    %v505 = vunpack.c.l.s4 839922192
    %v506 = vunpack.c.0.s8 %v505
    %v507 = vlaneseq
    %v508 = vshrl.u32 %v507, 7
    %v509 = vsub.s32 %v506, %v508
    %v510 = vrot.slane %v503, %v509
    %v512 = vadd.f32 %v498, %v510
    %v513 = vadd.f32 %v499, %v510
    %514 = vst [vmem:[#allocation7] sm:$0xff] %v512
    %515 = vst [vmem:[#allocation7 + $0x8] sm:$0xf] %v513
    %s516 = scalar_lea.vmem [#allocation4], 12
    %v517 = vld [vmem:[%s516] sm:$0xff]
    %v518 = vld [vmem:[%s516 + $0x8] sm:$0xf]
    %v520 = vcombine.high %v517, %v517
    %v522 = vsel %vm70, %v517, 0.0
    %v523 = vrot.slane %v522, 4
    %v524 = vadd.f32 %v522, %v523
    %v525 = vrot.slane %v524, 2
    %v526 = vadd.f32 %v524, %v525
    %v527 = vrot.slane %v526, 1
    %v528 = vadd.f32 %v526, %v527
    %v529 = vsel %vm70, %v520, 0.0
    %v530 = vrot.slane %v529, 4
    %v531 = vadd.f32 %v529, %v530
    %v532 = vrot.slane %v531, 2
    %v533 = vadd.f32 %v531, %v532
    %v534 = vrot.slane %v533, 1
    %v535 = vadd.f32 %v533, %v534
    %v536 = vsel %vm70, %v518, 0.0
    %v537 = vrot.slane %v536, 4
    %v538 = vadd.f32 %v536, %v537
    %v539 = vrot.slane %v538, 2
    %v540 = vadd.f32 %v538, %v539
    %v541 = vrot.slane %v540, 1
    %v542 = vadd.f32 %v540, %v541
    %v543 = vsel %vm45, %v528, 0.0
    %v544 = vsel %vm46, %v535, 0.0
    %v545 = vsel %vm47, %v542, 0.0
    %v546 = vmul.f32 %v517, %v517
    %v547 = vmul.f32 %v518, %v518
    %v549 = vcombine.high %v546, %v546
    %v551 = vsel %vm70, %v546, 0.0
    %v552 = vrot.slane %v551, 4
    %v553 = vadd.f32 %v551, %v552
    %v554 = vrot.slane %v553, 2
    %v555 = vadd.f32 %v553, %v554
    %v556 = vrot.slane %v555, 1
    %v557 = vadd.f32 %v555, %v556
    %v558 = vsel %vm70, %v549, 0.0
    %v559 = vrot.slane %v558, 4
    %v560 = vadd.f32 %v558, %v559
    %v561 = vrot.slane %v560, 2
    %v562 = vadd.f32 %v560, %v561
    %v563 = vrot.slane %v562, 1
    %v564 = vadd.f32 %v562, %v563
    %v565 = vsel %vm70, %v547, 0.0
    %v566 = vrot.slane %v565, 4
    %v567 = vadd.f32 %v565, %v566
    %v568 = vrot.slane %v567, 2
    %v569 = vadd.f32 %v567, %v568
    %v570 = vrot.slane %v569, 1
    %v571 = vadd.f32 %v569, %v570
    %v572 = vsel %vm45, %v557, 0.0
    %v573 = vsel %vm46, %v564, 0.0
    %v574 = vsel %vm47, %v571, 0.0
    %v575 = vld [vmem:[#allocation2 + $0x1] sm:$0x1]
    %v576 = vld [vmem:[#allocation3 + $0x1] sm:$0x1]
    %v577 = vadd.f32 %v543, %v544
    %v578 = vadd.f32 %v577, %v545
    %579 = vadd.xlane.f32.xlu0 %v578
    %v580 = vpop.xlane.xlu0 %579
    %v581 = vadd.f32 %v575, %v580
    %582 = vst.msk [vmem:[#allocation2 + $0x1] sm:$0x1] %vm131, %v581
    %v583 = vadd.f32 %v572, %v573
    %v584 = vadd.f32 %v583, %v574
    %585 = vadd.xlane.f32.xlu0 %v584
    %v586 = vpop.xlane.xlu0 %585
    %v587 = vadd.f32 %v576, %v586
    %588 = vst.msk [vmem:[#allocation3 + $0x1] sm:$0x1] %vm131, %v587
    %589 = vrot.lane.b32.xlu0 %v543, 1
    %v590 = vpop.permute.xlu0 %589
    %591 = vrot.lane.b32.xlu0 %v544, 1
    %v592 = vpop.permute.xlu0 %591
    %593 = vrot.lane.b32.xlu0 %v545, 1
    %v594 = vpop.permute.xlu0 %593
    %v595 = vsel %vm145, %v592, %v594
    %v596 = vsel %vm145, %v590, %v592
    %v597 = vsel %vm145, %v594, %v590
    %v598 = vsel %vm149, %v597, 0.0
    %v599 = vsel %vm150, %v596, 0.0
    %v600 = vsel %vm151, %v595, 0.0
    %v601 = vadd.f32 %v543, %v598
    %v602 = vadd.f32 %v544, %v599
    %v603 = vadd.f32 %v545, %v600
    %604 = vrot.lane.b32.xlu0 %v601, 2
    %v605 = vpop.permute.xlu0 %604
    %606 = vrot.lane.b32.xlu0 %v602, 2
    %v607 = vpop.permute.xlu0 %606
    %608 = vrot.lane.b32.xlu0 %v603, 2
    %v609 = vpop.permute.xlu0 %608
    %v610 = vsel %vm164, %v607, %v609
    %v611 = vsel %vm164, %v605, %v607
    %v612 = vsel %vm164, %v609, %v605
    %v613 = vsel %vm168, %v612, 0.0
    %v614 = vsel %vm169, %v611, 0.0
    %v615 = vsel %vm170, %v610, 0.0
    %v616 = vadd.f32 %v601, %v613
    %v617 = vadd.f32 %v602, %v614
    %v618 = vadd.f32 %v603, %v615
    %619 = vrot.lane.b32.xlu0 %v616, 4
    %v620 = vpop.permute.xlu0 %619
    %621 = vrot.lane.b32.xlu0 %v617, 4
    %v622 = vpop.permute.xlu0 %621
    %623 = vrot.lane.b32.xlu0 %v618, 4
    %v624 = vpop.permute.xlu0 %623
    %v625 = vsel %vm183, %v622, %v624
    %v626 = vsel %vm183, %v620, %v622
    %v627 = vsel %vm183, %v624, %v620
    %v628 = vsel %vm187, %v627, 0.0
    %v629 = vsel %vm188, %v626, 0.0
    %v630 = vsel %vm189, %v625, 0.0
    %v631 = vadd.f32 %v616, %v628
    %v632 = vadd.f32 %v617, %v629
    %v633 = vadd.f32 %v618, %v630
    %634 = vrot.lane.b32.xlu0 %v631, 8
    %v635 = vpop.permute.xlu0 %634
    %636 = vrot.lane.b32.xlu0 %v632, 8
    %v637 = vpop.permute.xlu0 %636
    %638 = vrot.lane.b32.xlu0 %v633, 8
    %v639 = vpop.permute.xlu0 %638
    %v640 = vsel %vm202, %v637, %v639
    %v641 = vsel %vm202, %v635, %v637
    %v642 = vsel %vm202, %v639, %v635
    %v643 = vsel %vm206, %v642, 0.0
    %v644 = vsel %vm207, %v641, 0.0
    %v645 = vsel %vm208, %v640, 0.0
    %v646 = vadd.f32 %v631, %v643
    %v647 = vadd.f32 %v632, %v644
    %v648 = vadd.f32 %v633, %v645
    %649 = vrot.lane.b32.xlu0 %v646, 16
    %v650 = vpop.permute.xlu0 %649
    %651 = vrot.lane.b32.xlu0 %v647, 16
    %v652 = vpop.permute.xlu0 %651
    %653 = vrot.lane.b32.xlu0 %v648, 16
    %v654 = vpop.permute.xlu0 %653
    %v655 = vsel %vm221, %v652, %v654
    %v656 = vsel %vm221, %v650, %v652
    %v657 = vsel %vm221, %v654, %v650
    %v658 = vsel %vm225, %v657, 0.0
    %v659 = vsel %vm226, %v656, 0.0
    %v660 = vsel %vm227, %v655, 0.0
    %v661 = vadd.f32 %v646, %v658
    %v662 = vadd.f32 %v647, %v659
    %v663 = vadd.f32 %v648, %v660
    %664 = vrot.lane.b32.xlu0 %v661, 32
    %v665 = vpop.permute.xlu0 %664
    %666 = vrot.lane.b32.xlu0 %v662, 32
    %v667 = vpop.permute.xlu0 %666
    %668 = vrot.lane.b32.xlu0 %v663, 32
    %v669 = vpop.permute.xlu0 %668
    %v670 = vsel %vm240, %v667, %v669
    %v671 = vsel %vm240, %v665, %v667
    %v672 = vsel %vm240, %v669, %v665
    %v673 = vsel %vm244, %v672, 0.0
    %v674 = vsel %vm245, %v671, 0.0
    %v675 = vsel %vm246, %v670, 0.0
    %v676 = vadd.f32 %v661, %v673
    %v677 = vadd.f32 %v662, %v674
    %v678 = vadd.f32 %v663, %v675
    %679 = vrot.lane.b32.xlu0 %v676, 64
    %v680 = vpop.permute.xlu0 %679
    %681 = vrot.lane.b32.xlu0 %v677, 64
    %v682 = vpop.permute.xlu0 %681
    %683 = vrot.lane.b32.xlu0 %v678, 64
    %v684 = vpop.permute.xlu0 %683
    %v685 = vsel %vm259, %v682, %v684
    %v686 = vsel %vm259, %v680, %v682
    %v687 = vsel %vm259, %v684, %v680
    %v688 = vsel %vm263, %v687, 0.0
    %v689 = vsel %vm264, %v686, 0.0
    %v690 = vsel %vm265, %v685, 0.0
    %v691 = vadd.f32 %v676, %v688
    %v692 = vadd.f32 %v677, %v689
    %v693 = vadd.f32 %v678, %v690
    %v694 = vsel %vm272, %v693, 0.0
    %v695 = vsel %vm273, %v691, 0.0
    %v696 = vsel %vm274, %v692, 0.0
    %v697 = vadd.f32 %v691, %v694
    %v698 = vadd.f32 %v692, %v695
    %v699 = vadd.f32 %v693, %v696
    %v700 = vsel %vm281, %v698, 0.0
    %v701 = vsel %vm282, %v699, 0.0
    %v702 = vsel %vm283, %v697, 0.0
    %v703 = vadd.f32 %v697, %v700
    %v704 = vadd.f32 %v698, %v701
    %v705 = vadd.f32 %v699, %v702
    %707 = vset.pattern.permute.xlu0 0
    %708 = vperm.xlu0 %707, %v575
    %v709 = vpop.permute.xlu0 %708
    %v711 = vadd.f32 %v703, %v709
    %v712 = vadd.f32 %v704, %v709
    %v713 = vadd.f32 %v705, %v709
    %714 = vrot.lane.b32.xlu0 %v572, 1
    %v715 = vpop.permute.xlu0 %714
    %716 = vrot.lane.b32.xlu0 %v573, 1
    %v717 = vpop.permute.xlu0 %716
    %718 = vrot.lane.b32.xlu0 %v574, 1
    %v719 = vpop.permute.xlu0 %718
    %v720 = vsel %vm145, %v717, %v719
    %v721 = vsel %vm145, %v715, %v717
    %v722 = vsel %vm145, %v719, %v715
    %v723 = vsel %vm149, %v722, 0.0
    %v724 = vsel %vm150, %v721, 0.0
    %v725 = vsel %vm151, %v720, 0.0
    %v726 = vadd.f32 %v572, %v723
    %v727 = vadd.f32 %v573, %v724
    %v728 = vadd.f32 %v574, %v725
    %729 = vrot.lane.b32.xlu0 %v726, 2
    %v730 = vpop.permute.xlu0 %729
    %731 = vrot.lane.b32.xlu0 %v727, 2
    %v732 = vpop.permute.xlu0 %731
    %733 = vrot.lane.b32.xlu0 %v728, 2
    %v734 = vpop.permute.xlu0 %733
    %v735 = vsel %vm164, %v732, %v734
    %v736 = vsel %vm164, %v730, %v732
    %v737 = vsel %vm164, %v734, %v730
    %v738 = vsel %vm168, %v737, 0.0
    %v739 = vsel %vm169, %v736, 0.0
    %v740 = vsel %vm170, %v735, 0.0
    %v741 = vadd.f32 %v726, %v738
    %v742 = vadd.f32 %v727, %v739
    %v743 = vadd.f32 %v728, %v740
    %744 = vrot.lane.b32.xlu0 %v741, 4
    %v745 = vpop.permute.xlu0 %744
    %746 = vrot.lane.b32.xlu0 %v742, 4
    %v747 = vpop.permute.xlu0 %746
    %748 = vrot.lane.b32.xlu0 %v743, 4
    %v749 = vpop.permute.xlu0 %748
    %v750 = vsel %vm183, %v747, %v749
    %v751 = vsel %vm183, %v745, %v747
    %v752 = vsel %vm183, %v749, %v745
    %v753 = vsel %vm187, %v752, 0.0
    %v754 = vsel %vm188, %v751, 0.0
    %v755 = vsel %vm189, %v750, 0.0
    %v756 = vadd.f32 %v741, %v753
    %v757 = vadd.f32 %v742, %v754
    %v758 = vadd.f32 %v743, %v755
    %759 = vrot.lane.b32.xlu0 %v756, 8
    %v760 = vpop.permute.xlu0 %759
    %761 = vrot.lane.b32.xlu0 %v757, 8
    %v762 = vpop.permute.xlu0 %761
    %763 = vrot.lane.b32.xlu0 %v758, 8
    %v764 = vpop.permute.xlu0 %763
    %v765 = vsel %vm202, %v762, %v764
    %v766 = vsel %vm202, %v760, %v762
    %v767 = vsel %vm202, %v764, %v760
    %v768 = vsel %vm206, %v767, 0.0
    %v769 = vsel %vm207, %v766, 0.0
    %v770 = vsel %vm208, %v765, 0.0
    %v771 = vadd.f32 %v756, %v768
    %v772 = vadd.f32 %v757, %v769
    %v773 = vadd.f32 %v758, %v770
    %774 = vrot.lane.b32.xlu0 %v771, 16
    %v775 = vpop.permute.xlu0 %774
    %776 = vrot.lane.b32.xlu0 %v772, 16
    %v777 = vpop.permute.xlu0 %776
    %778 = vrot.lane.b32.xlu0 %v773, 16
    %v779 = vpop.permute.xlu0 %778
    %v780 = vsel %vm221, %v777, %v779
    %v781 = vsel %vm221, %v775, %v777
    %v782 = vsel %vm221, %v779, %v775
    %v783 = vsel %vm225, %v782, 0.0
    %v784 = vsel %vm226, %v781, 0.0
    %v785 = vsel %vm227, %v780, 0.0
    %v786 = vadd.f32 %v771, %v783
    %v787 = vadd.f32 %v772, %v784
    %v788 = vadd.f32 %v773, %v785
    %789 = vrot.lane.b32.xlu0 %v786, 32
    %v790 = vpop.permute.xlu0 %789
    %791 = vrot.lane.b32.xlu0 %v787, 32
    %v792 = vpop.permute.xlu0 %791
    %793 = vrot.lane.b32.xlu0 %v788, 32
    %v794 = vpop.permute.xlu0 %793
    %v795 = vsel %vm240, %v792, %v794
    %v796 = vsel %vm240, %v790, %v792
    %v797 = vsel %vm240, %v794, %v790
    %v798 = vsel %vm244, %v797, 0.0
    %v799 = vsel %vm245, %v796, 0.0
    %v800 = vsel %vm246, %v795, 0.0
    %v801 = vadd.f32 %v786, %v798
    %v802 = vadd.f32 %v787, %v799
    %v803 = vadd.f32 %v788, %v800
    %804 = vrot.lane.b32.xlu0 %v801, 64
    %v805 = vpop.permute.xlu0 %804
    %806 = vrot.lane.b32.xlu0 %v802, 64
    %v807 = vpop.permute.xlu0 %806
    %808 = vrot.lane.b32.xlu0 %v803, 64
    %v809 = vpop.permute.xlu0 %808
    %v810 = vsel %vm259, %v807, %v809
    %v811 = vsel %vm259, %v805, %v807
    %v812 = vsel %vm259, %v809, %v805
    %v813 = vsel %vm263, %v812, 0.0
    %v814 = vsel %vm264, %v811, 0.0
    %v815 = vsel %vm265, %v810, 0.0
    %v816 = vadd.f32 %v801, %v813
    %v817 = vadd.f32 %v802, %v814
    %v818 = vadd.f32 %v803, %v815
    %v819 = vsel %vm272, %v818, 0.0
    %v820 = vsel %vm273, %v816, 0.0
    %v821 = vsel %vm274, %v817, 0.0
    %v822 = vadd.f32 %v816, %v819
    %v823 = vadd.f32 %v817, %v820
    %v824 = vadd.f32 %v818, %v821
    %v825 = vsel %vm281, %v823, 0.0
    %v826 = vsel %vm282, %v824, 0.0
    %v827 = vsel %vm283, %v822, 0.0
    %v828 = vadd.f32 %v822, %v825
    %v829 = vadd.f32 %v823, %v826
    %v830 = vadd.f32 %v824, %v827
    %832 = vset.pattern.permute.xlu0 0
    %833 = vperm.xlu0 %832, %v576
    %v834 = vpop.permute.xlu0 %833
    %v836 = vadd.f32 %v828, %v834
    %v837 = vadd.f32 %v829, %v834
    %v838 = vadd.f32 %v830, %v834
    %v839 = vmul.f32 %v711, %v58
    %v840 = vmul.f32 %v712, %v60
    %v841 = vmul.f32 %v713, %v62
    %v842 = vmul.f32 %v839, 2.0
    %v843 = vmul.f32 %v840, 2.0
    %v844 = vmul.f32 %v841, 2.0
    %v845 = vmul.f32 %v842, %v711
    %v846 = vmul.f32 %v843, %v712
    %v847 = vmul.f32 %v844, %v713
    %v848 = vsub.f32 %v836, %v845
    %v849 = vsub.f32 %v837, %v846
    %v850 = vsub.f32 %v838, %v847
    %v851 = vmul.f32 %v848, %v58
    %v852 = vmul.f32 %v849, %v60
    %v853 = vmul.f32 %v850, %v62
    %v854 = vmul.f32 %v839, %v839
    %v855 = vmul.f32 %v840, %v840
    %v856 = vmul.f32 %v841, %v841
    %v857 = vadd.f32 %v851, %v854
    %v858 = vadd.f32 %v852, %v855
    %v859 = vadd.f32 %v853, %v856
    %v860 = vadd.f32 %v857, 1e-08
    %v861 = vadd.f32 %v858, 1e-08
    %v862 = vadd.f32 %v859, 1e-08
    %v863 = vrsqrt.pop %v860
    %v864 = vrsqrt.pop %v861
    %v865 = vrsqrt.pop %v862
    %v866 = vlaneseq
    %v867 = vshrl.u32 %v866, 7
    %v868 = vsub.s32 0, %v867
    %v869 = vrot.slane %v839, %v868
    %v870 = vlaneseq
    %v871 = vshrl.u32 %v870, 7
    %v872 = vsub.s32 0, %v871
    %v873 = vrot.slane %v840, %v872
    %v874 = vlaneseq
    %v875 = vshrl.u32 %v874, 7
    %v876 = vsub.s32 0, %v875
    %v877 = vrot.slane %v841, %v876
    %v880 = vcombine.low %v869, %v873
    %v882 = vsub.f32 %v517, %v880
    %v883 = vsub.f32 %v518, %v877
    %v884 = vlaneseq
    %v885 = vshrl.u32 %v884, 7
    %v886 = vsub.s32 0, %v885
    %v887 = vrot.slane %v863, %v886
    %v888 = vlaneseq
    %v889 = vshrl.u32 %v888, 7
    %v890 = vsub.s32 0, %v889
    %v891 = vrot.slane %v864, %v890
    %v892 = vlaneseq
    %v893 = vshrl.u32 %v892, 7
    %v894 = vsub.s32 0, %v893
    %v895 = vrot.slane %v865, %v894
    %v898 = vcombine.low %v887, %v891
    %v900 = vmul.f32 %v882, %v898
    %v901 = vmul.f32 %v883, %v895
    %v902 = vmul.f32 %v900, %v496
    %v903 = vmul.f32 %v901, %v496
    %v904 = vadd.f32 %v902, %v510
    %v905 = vadd.f32 %v903, %v510
    %s906 = scalar_lea.vmem [#allocation7], 12
    %907 = vst [vmem:[%s906] sm:$0xff] %v904
    %908 = vst [vmem:[%s906 + $0x8] sm:$0xf] %v905
    // Predicated region
    $region22: #{cln_forward.1} parent=1 // pred_check
      _
    $region23: #{cln_forward.1} parent=1 // pred_check_branch
      %910 = sbr.rel (0) target = $region25
    $region24: #{cln_forward.1} parent=1 // pred_region
      %s912 = ssub.s32 384, 384
      %913 = vsyncadd [#allocation6], %s912
      %s914 = sshll.u32 [#allocation7], 4
      %s915 = int_to_ptr.vmem [resolvable:$true] %s914
      %920 = dma.vmem_to_hbm [thread:$0]  %s915, 384, %s3, [#allocation6], 192, 192, 12
    $region25: #{cln_forward.1} parent=1 // pred_fallthru
      _
    // Predicated region
    $region26: #{cln_forward.1} parent=1 // pred_check
      _
    $region27: #{cln_forward.1} parent=1 // pred_check_branch
      %922 = sbr.rel (0) target = $region29
    $region28: #{cln_forward.1} parent=1 // pred_region
      %923 = dma.done [#allocation6], 384
    $region29: #{cln_forward.1} parent=1 // pred_fallthru
      _
    %924 = vsyncpa [#allocation5], 1
    %925 = vsyncpa [#allocation6], 1

</llo_original>
